<compile_context>
chip_gen: v7x
topology: tpu7x:2x2x1
jax: 0.10.0
libtpu: 0.0.40
codegen_flags: <defaults>
</compile_context>

<pallas_src>
from functools import partial

import jax
import jax.numpy as jnp
from jax import lax
from jax.experimental import pallas as pl
from jax.experimental.pallas import tpu as pltpu


def _recip(x):
    """1/x via EUP approx reciprocal + one Newton-Raphson step (~f32 exact).

    x == 0 is routed explicitly to +inf: the NR update would yield NaN there,
    and the exact-divide semantics (1/0 = +inf, later clamped by min(., 1))
    are required so lane-padded / all-zero columns contribute nothing.
    """
    r = pl.reciprocal(x, approx=True)
    r = r * (2.0 - x * r)
    return jnp.where(x == 0.0, jnp.inf, r)


def _partial_sinkhorn_kernel(x_ref, o_ref, *, max_iters, neg_inv_tau, do_exp, chunk):
    """One grid step: a (Tb, n1, n2p) slab of the batch.

    The slab is processed in chunks of `chunk` batch elements.  Each chunk's
    X_exp tile is computed once and held in vregs for all iterations; the
    `chunk` independent lu->rv chains are updated together per Sinkhorn
    iteration so the serial-recurrence latency is hidden.
    """
    tb, n1, n2p = x_ref.shape
    n_chunks = tb // chunk  # tb is constructed as a multiple of chunk

    @pl.loop(0, n_chunks)
    def _per_chunk(c):
        g0 = pl.multiple_of(c * chunk, chunk)
        xw = x_ref[pl.ds(g0, chunk), :, :].astype(jnp.float32)   # (G, n1, n2p)
        # exp(-X/tau) == exp(X * (-1/tau)): folded divide, computed once per
        # chunk and reused (in vregs) by every iteration and the epilogue.
        xe = jnp.exp(xw * neg_inv_tau) if do_exp else xw

        def body(_, carry):
            lu, rv = carry
            # lu = 1 / rowsum(X_exp * rv): exact f32 VPU multiply + XLU lane
            # reduction, batched over the G independent chains.
            rs = jnp.sum(xe * rv, axis=2, keepdims=True)          # (G, n1, 1)
            lu = _recip(rs)
            # rv = min(1 / colsum(X_exp * lu), 1): sublane reduction.
            cs = jnp.sum(xe * lu, axis=1, keepdims=True)          # (G, 1, n2p)
            rv = jnp.minimum(_recip(cs), 1.0)
            return lu, rv

        lu0 = jnp.ones((chunk, n1, 1), jnp.float32)
        rv0 = jnp.ones((chunk, 1, n2p), jnp.float32)
        lu, rv = lax.fori_loop(0, max_iters, body, (lu0, rv0),
                               unroll=max_iters <= 32)

        # diag(lu) @ X_exp @ diag(rv) == lu * X_exp * rv (pure broadcasts).
        # Cast to the output dtype in the store (halves writeback for bf16).
        o_ref[pl.ds(g0, chunk), :, :] = (lu * xe * rv).astype(o_ref.dtype)


def partial_sinkhorn(X, max_iters=20, tau=0.1, exp=True):
    """Pallas TPU forward pass matching PartialSinkhorn.forward."""
    assert X.ndim == 3, f"Error: x.shape = {X.shape}"
    if X.shape[1] > X.shape[2]:
        # Matches the PyTorch module: result is returned in transposed shape.
        X = jnp.swapaxes(X, 1, 2)
    bs, n1, n2 = X.shape
    out_dtype = X.dtype

    # Lane padding: n2 -> multiple of 128 so every vector op / store is
    # lane-dense.  Pad columns get X_exp == 0 (huge cost under exp, literal 0
    # otherwise): zero contribution to row sums, rv_pad = min(1/0, 1) = 1, and
    # their outputs are sliced away below -> real lu/rv are unaffected.
    n2p = ((n2 + 127) // 128) * 128
    if n2p != n2:
        col_pad = 1e30 if exp else 0.0
        X = jnp.pad(X, ((0, 0), (0, 0), (0, n2p - n2)), constant_values=col_pad)

    # ---- generation-aware sizing -------------------------------------------
    vmem_cap = 64 << 20
    try:
        vmem_cap = int(getattr(pltpu.get_tpu_info(), "vmem_capacity_bytes", vmem_cap))
    except Exception:
        pass
    # v7x: 64 MiB VMEM / TC and 2 TCs per chip; v5e / v6e: 128 MiB and 1 TC.
    num_tc = 2 if vmem_cap <= (64 << 20) else 1

    elem = n1 * n2p
    in_b = elem * X.dtype.itemsize
    out_b = elem * jnp.dtype(out_dtype).itemsize
    per_elem_block = 2 * in_b + 2 * out_b      # double-buffered in + out blocks

    # Chunk of G batch elements iterated together: keep the chunk's f32 X_exp
    # <= ~64 KiB (~16 vregs) so it stays register-resident across iterations.
    g = max(1, min(bs, (64 * 1024) // max(elem * 4, 1)))

    # Block = C chunks, targeting ~70% of the per-core VMEM so per-grid-step
    # overhead is amortized; on multi-core parts keep >= num_tc grid steps.
    budget = int(0.70 * vmem_cap)
    c = max(1, budget // max(g * per_elem_block, 1))
    tb = min(g * c, ((bs + g - 1) // g) * g)
    if num_tc > 1 and bs > g:
        cap = ((pl.cdiv(bs, num_tc) + g - 1) // g) * g
        tb = min(tb, cap)
    tb = max(tb, g)
    grid_b = pl.cdiv(bs, tb)
    bs_p = grid_b * tb
    if bs_p != bs:
        # Padded batch slabs get X_exp == 1 everywhere -> finite iterates,
        # computed independently and discarded by the final slice.
        batch_pad = 0.0 if exp else 1.0
        X = jnp.pad(X, ((0, bs_p - bs), (0, 0), (0, 0)), constant_values=batch_pad)

    footprint = tb * per_elem_block + (2 << 20)
    vmem_limit = int(min(max(footprint, 16 << 20), int(0.9 * vmem_cap)))

    kernel = partial(_partial_sinkhorn_kernel, max_iters=int(max_iters),
                     neg_inv_tau=-1.0 / float(tau), do_exp=bool(exp), chunk=g)
    out = pl.pallas_call(
        kernel,
        out_shape=jax.ShapeDtypeStruct((bs_p, n1, n2p), out_dtype),
        grid=(grid_b,),
        in_specs=[pl.BlockSpec((tb, n1, n2p), lambda b: (b, 0, 0))],
        out_specs=pl.BlockSpec((tb, n1, n2p), lambda b: (b, 0, 0)),
        compiler_params=pltpu.CompilerParams(
            dimension_semantics=("parallel",),
            vmem_limit_bytes=vmem_limit,
        ),
    )(X)

    if bs_p != bs or n2p != n2:
        out = out[:bs, :, :n2]
    return out


def _reference(X, max_iters=20, tau=0.1, exp=True):
    """Pure-JAX reference mirroring the PyTorch forward (exact f32 reductions)."""
    if X.shape[1] > X.shape[2]:
        X = jnp.swapaxes(X, 1, 2)
    X = X.astype(jnp.float32)
    bs, n1, n2 = X.shape
    Xe = jnp.exp(-X / tau) if exp else X
    lu = jnp.ones((bs, n1, 1), jnp.float32)
    rv = jnp.ones((bs, 1, n2), jnp.float32)
    for _ in range(max_iters):
        lu = 1.0 / jnp.sum(Xe * rv, axis=2, keepdims=True)                   # bmm(Xe, rv)
        rv = jnp.minimum(1.0 / jnp.sum(Xe * lu, axis=1, keepdims=True), 1.0)  # bmm(Xe^T, lu)
    return lu * Xe * rv


if __name__ == "__main__":
    key = jax.random.PRNGKey(0)
    k1, k2 = jax.random.split(key)

    # Case 1: canonical exp path (positive cost matrix), bs=2, n1=8, n2=16.
    X1 = jax.random.uniform(k1, (2, 8, 16), dtype=jnp.float32)
    out1 = jax.block_until_ready(partial_sinkhorn(X1, max_iters=20, tau=0.1, exp=True))
    ref1 = _reference(X1, max_iters=20, tau=0.1, exp=True)
    assert out1.shape == (2, 8, 16)
    assert out1.dtype == X1.dtype
    assert jnp.allclose(out1, ref1, rtol=1e-3, atol=1e-6), (
        f"max abs diff {jnp.max(jnp.abs(out1 - ref1))}")

    # Case 2: exp=False path, odd batch (exercises lane padding + chunking).
    X2 = jax.random.uniform(k2, (3, 8, 16), dtype=jnp.float32) + 0.1
    out2 = jax.block_until_ready(partial_sinkhorn(X2, max_iters=20, tau=0.1, exp=False))
    ref2 = _reference(X2, max_iters=20, tau=0.1, exp=False)
    assert out2.shape == (3, 8, 16)
    assert out2.dtype == X2.dtype
    assert jnp.allclose(out2, ref2, rtol=1e-3, atol=1e-6), (
        f"max abs diff {jnp.max(jnp.abs(out2 - ref2))}")

    print("KERNEL_OK")
</pallas_src>

<mosaic_0001>
module attributes {stable_mosaic.version = 11 : i64} {
  func.func @_partial_sinkhorn_kernel(%arg0: i32, %arg1: memref<2x8x128xf32, #tpu.memory_space<vmem>>, %arg2: memref<2x8x128xf32, #tpu.memory_space<vmem>>) attributes {dimension_semantics = [#tpu.dimension_semantics<parallel>], iteration_bounds = array<i64: 1>, scalar_prefetch = 0 : i64, scratch_operands = 0 : i64, tpu.core_type = #tpu.core_type<tc>, window_params = [{transform_indices = @transform_0, window_bounds = array<i64: 2, 8, 128>}, {transform_indices = @transform_1, window_bounds = array<i64: 2, 8, 128>}]} {
    %c0_i32 = arith.constant 0 : i32
    %c1_i32 = arith.constant 1 : i32
    %0 = arith.muli %c0_i32, %c1_i32 : i32
    %c0_i32_0 = arith.constant 0 : i32
    %1 = arith.addi %c0_i32_0, %0 : i32
    %c2_i32 = arith.constant 2 : i32
    %2 = arith.muli %1, %c2_i32 : i32
    %3 = tpu.assume_multiple %2, 2 : i32
    %4 = arith.index_cast %3 : i32 to index
    %c0 = arith.constant 0 : index
    %c0_1 = arith.constant 0 : index
    %5 = vector.load %arg1[%4, %c0, %c0_1] : memref<2x8x128xf32, #tpu.memory_space<vmem>>, vector<2x8x128xf32>
    %cst = arith.constant -1.000000e+01 : f32
    %6 = vector.broadcast %cst : f32 to vector<2x8x128xf32>
    %7 = arith.mulf %5, %6 : vector<2x8x128xf32>
    %8 = math.exp %7 : vector<2x8x128xf32>
    %cst_2 = arith.constant 1.000000e+00 : f32
    %9 = vector.broadcast %cst_2 : f32 to vector<2x8x1xf32>
    %cst_3 = arith.constant 1.000000e+00 : f32
    %10 = vector.broadcast %cst_3 : f32 to vector<2x1x128xf32>
    %c0_i32_4 = arith.constant 0 : i32
    %11 = vector.broadcast %10 : vector<2x1x128xf32> to vector<2x8x128xf32>
    %12 = arith.mulf %8, %11 : vector<2x8x128xf32>
    %cst_5 = arith.constant dense<0.000000e+00> : vector<2x8xf32>
    %13 = vector.multi_reduction <add>, %12, %cst_5 [2] : vector<2x8x128xf32> to vector<2x8xf32>
    %14 = vector.shape_cast %13 : vector<2x8xf32> to vector<2x8x1xf32>
    %15 = tpu.reciprocal %14 {approx = true} : vector<2x8x1xf32> -> vector<2x8x1xf32>
    %16 = arith.mulf %14, %15 : vector<2x8x1xf32>
    %cst_6 = arith.constant 2.000000e+00 : f32
    %17 = vector.broadcast %cst_6 : f32 to vector<2x8x1xf32>
    %18 = arith.subf %17, %16 : vector<2x8x1xf32>
    %19 = arith.mulf %15, %18 : vector<2x8x1xf32>
    %cst_7 = arith.constant 0.000000e+00 : f32
    %20 = vector.broadcast %cst_7 : f32 to vector<2x8x1xf32>
    %21 = arith.cmpf oeq, %14, %20 : vector<2x8x1xf32>
    %cst_8 = arith.constant 0x7F800000 : f32
    %22 = vector.broadcast %cst_8 : f32 to vector<2x8x1xf32>
    %23 = arith.select %21, %22, %19 : vector<2x8x1xi1>, vector<2x8x1xf32>
    %24 = vector.broadcast %23 : vector<2x8x1xf32> to vector<2x8x128xf32>
    %25 = arith.mulf %8, %24 : vector<2x8x128xf32>
    %cst_9 = arith.constant dense<0.000000e+00> : vector<2x128xf32>
    %26 = vector.multi_reduction <add>, %25, %cst_9 [1] : vector<2x8x128xf32> to vector<2x128xf32>
    %27 = vector.shape_cast %26 : vector<2x128xf32> to vector<2x1x128xf32>
    %28 = tpu.reciprocal %27 {approx = true} : vector<2x1x128xf32> -> vector<2x1x128xf32>
    %29 = arith.mulf %27, %28 : vector<2x1x128xf32>
    %cst_10 = arith.constant 2.000000e+00 : f32
    %30 = vector.broadcast %cst_10 : f32 to vector<2x1x128xf32>
    %31 = arith.subf %30, %29 : vector<2x1x128xf32>
    %32 = arith.mulf %28, %31 : vector<2x1x128xf32>
    %cst_11 = arith.constant 0.000000e+00 : f32
    %33 = vector.broadcast %cst_11 : f32 to vector<2x1x128xf32>
    %34 = arith.cmpf oeq, %27, %33 : vector<2x1x128xf32>
    %cst_12 = arith.constant 0x7F800000 : f32
    %35 = vector.broadcast %cst_12 : f32 to vector<2x1x128xf32>
    %36 = arith.select %34, %35, %32 : vector<2x1x128xi1>, vector<2x1x128xf32>
    %cst_13 = arith.constant 1.000000e+00 : f32
    %37 = vector.broadcast %cst_13 : f32 to vector<2x1x128xf32>
    %38 = arith.minimumf %36, %37 : vector<2x1x128xf32>
    %c1_i32_14 = arith.constant 1 : i32
    %39 = vector.broadcast %38 : vector<2x1x128xf32> to vector<2x8x128xf32>
    %40 = arith.mulf %8, %39 : vector<2x8x128xf32>
    %cst_15 = arith.constant dense<0.000000e+00> : vector<2x8xf32>
    %41 = vector.multi_reduction <add>, %40, %cst_15 [2] : vector<2x8x128xf32> to vector<2x8xf32>
    %42 = vector.shape_cast %41 : vector<2x8xf32> to vector<2x8x1xf32>
    %43 = tpu.reciprocal %42 {approx = true} : vector<2x8x1xf32> -> vector<2x8x1xf32>
    %44 = arith.mulf %42, %43 : vector<2x8x1xf32>
    %cst_16 = arith.constant 2.000000e+00 : f32
    %45 = vector.broadcast %cst_16 : f32 to vector<2x8x1xf32>
    %46 = arith.subf %45, %44 : vector<2x8x1xf32>
    %47 = arith.mulf %43, %46 : vector<2x8x1xf32>
    %cst_17 = arith.constant 0.000000e+00 : f32
    %48 = vector.broadcast %cst_17 : f32 to vector<2x8x1xf32>
    %49 = arith.cmpf oeq, %42, %48 : vector<2x8x1xf32>
    %cst_18 = arith.constant 0x7F800000 : f32
    %50 = vector.broadcast %cst_18 : f32 to vector<2x8x1xf32>
    %51 = arith.select %49, %50, %47 : vector<2x8x1xi1>, vector<2x8x1xf32>
    %52 = vector.broadcast %51 : vector<2x8x1xf32> to vector<2x8x128xf32>
    %53 = arith.mulf %8, %52 : vector<2x8x128xf32>
    %cst_19 = arith.constant dense<0.000000e+00> : vector<2x128xf32>
    %54 = vector.multi_reduction <add>, %53, %cst_19 [1] : vector<2x8x128xf32> to vector<2x128xf32>
    %55 = vector.shape_cast %54 : vector<2x128xf32> to vector<2x1x128xf32>
    %56 = tpu.reciprocal %55 {approx = true} : vector<2x1x128xf32> -> vector<2x1x128xf32>
    %57 = arith.mulf %55, %56 : vector<2x1x128xf32>
    %cst_20 = arith.constant 2.000000e+00 : f32
    %58 = vector.broadcast %cst_20 : f32 to vector<2x1x128xf32>
    %59 = arith.subf %58, %57 : vector<2x1x128xf32>
    %60 = arith.mulf %56, %59 : vector<2x1x128xf32>
    %cst_21 = arith.constant 0.000000e+00 : f32
    %61 = vector.broadcast %cst_21 : f32 to vector<2x1x128xf32>
    %62 = arith.cmpf oeq, %55, %61 : vector<2x1x128xf32>
    %cst_22 = arith.constant 0x7F800000 : f32
    %63 = vector.broadcast %cst_22 : f32 to vector<2x1x128xf32>
    %64 = arith.select %62, %63, %60 : vector<2x1x128xi1>, vector<2x1x128xf32>
    %cst_23 = arith.constant 1.000000e+00 : f32
    %65 = vector.broadcast %cst_23 : f32 to vector<2x1x128xf32>
    %66 = arith.minimumf %64, %65 : vector<2x1x128xf32>
    %c2_i32_24 = arith.constant 2 : i32
    %67 = vector.broadcast %66 : vector<2x1x128xf32> to vector<2x8x128xf32>
    %68 = arith.mulf %8, %67 : vector<2x8x128xf32>
    %cst_25 = arith.constant dense<0.000000e+00> : vector<2x8xf32>
    %69 = vector.multi_reduction <add>, %68, %cst_25 [2] : vector<2x8x128xf32> to vector<2x8xf32>
    %70 = vector.shape_cast %69 : vector<2x8xf32> to vector<2x8x1xf32>
    %71 = tpu.reciprocal %70 {approx = true} : vector<2x8x1xf32> -> vector<2x8x1xf32>
    %72 = arith.mulf %70, %71 : vector<2x8x1xf32>
    %cst_26 = arith.constant 2.000000e+00 : f32
    %73 = vector.broadcast %cst_26 : f32 to vector<2x8x1xf32>
    %74 = arith.subf %73, %72 : vector<2x8x1xf32>
    %75 = arith.mulf %71, %74 : vector<2x8x1xf32>
    %cst_27 = arith.constant 0.000000e+00 : f32
    %76 = vector.broadcast %cst_27 : f32 to vector<2x8x1xf32>
    %77 = arith.cmpf oeq, %70, %76 : vector<2x8x1xf32>
    %cst_28 = arith.constant 0x7F800000 : f32
    %78 = vector.broadcast %cst_28 : f32 to vector<2x8x1xf32>
    %79 = arith.select %77, %78, %75 : vector<2x8x1xi1>, vector<2x8x1xf32>
    %80 = vector.broadcast %79 : vector<2x8x1xf32> to vector<2x8x128xf32>
    %81 = arith.mulf %8, %80 : vector<2x8x128xf32>
    %cst_29 = arith.constant dense<0.000000e+00> : vector<2x128xf32>
    %82 = vector.multi_reduction <add>, %81, %cst_29 [1] : vector<2x8x128xf32> to vector<2x128xf32>
    %83 = vector.shape_cast %82 : vector<2x128xf32> to vector<2x1x128xf32>
    %84 = tpu.reciprocal %83 {approx = true} : vector<2x1x128xf32> -> vector<2x1x128xf32>
    %85 = arith.mulf %83, %84 : vector<2x1x128xf32>
    %cst_30 = arith.constant 2.000000e+00 : f32
    %86 = vector.broadcast %cst_30 : f32 to vector<2x1x128xf32>
    %87 = arith.subf %86, %85 : vector<2x1x128xf32>
    %88 = arith.mulf %84, %87 : vector<2x1x128xf32>
    %cst_31 = arith.constant 0.000000e+00 : f32
    %89 = vector.broadcast %cst_31 : f32 to vector<2x1x128xf32>
    %90 = arith.cmpf oeq, %83, %89 : vector<2x1x128xf32>
    %cst_32 = arith.constant 0x7F800000 : f32
    %91 = vector.broadcast %cst_32 : f32 to vector<2x1x128xf32>
    %92 = arith.select %90, %91, %88 : vector<2x1x128xi1>, vector<2x1x128xf32>
    %cst_33 = arith.constant 1.000000e+00 : f32
    %93 = vector.broadcast %cst_33 : f32 to vector<2x1x128xf32>
    %94 = arith.minimumf %92, %93 : vector<2x1x128xf32>
    %c3_i32 = arith.constant 3 : i32
    %95 = vector.broadcast %94 : vector<2x1x128xf32> to vector<2x8x128xf32>
    %96 = arith.mulf %8, %95 : vector<2x8x128xf32>
    %cst_34 = arith.constant dense<0.000000e+00> : vector<2x8xf32>
    %97 = vector.multi_reduction <add>, %96, %cst_34 [2] : vector<2x8x128xf32> to vector<2x8xf32>
    %98 = vector.shape_cast %97 : vector<2x8xf32> to vector<2x8x1xf32>
    %99 = tpu.reciprocal %98 {approx = true} : vector<2x8x1xf32> -> vector<2x8x1xf32>
    %100 = arith.mulf %98, %99 : vector<2x8x1xf32>
    %cst_35 = arith.constant 2.000000e+00 : f32
    %101 = vector.broadcast %cst_35 : f32 to vector<2x8x1xf32>
    %102 = arith.subf %101, %100 : vector<2x8x1xf32>
    %103 = arith.mulf %99, %102 : vector<2x8x1xf32>
    %cst_36 = arith.constant 0.000000e+00 : f32
    %104 = vector.broadcast %cst_36 : f32 to vector<2x8x1xf32>
    %105 = arith.cmpf oeq, %98, %104 : vector<2x8x1xf32>
    %cst_37 = arith.constant 0x7F800000 : f32
    %106 = vector.broadcast %cst_37 : f32 to vector<2x8x1xf32>
    %107 = arith.select %105, %106, %103 : vector<2x8x1xi1>, vector<2x8x1xf32>
    %108 = vector.broadcast %107 : vector<2x8x1xf32> to vector<2x8x128xf32>
    %109 = arith.mulf %8, %108 : vector<2x8x128xf32>
    %cst_38 = arith.constant dense<0.000000e+00> : vector<2x128xf32>
    %110 = vector.multi_reduction <add>, %109, %cst_38 [1] : vector<2x8x128xf32> to vector<2x128xf32>
    %111 = vector.shape_cast %110 : vector<2x128xf32> to vector<2x1x128xf32>
    %112 = tpu.reciprocal %111 {approx = true} : vector<2x1x128xf32> -> vector<2x1x128xf32>
    %113 = arith.mulf %111, %112 : vector<2x1x128xf32>
    %cst_39 = arith.constant 2.000000e+00 : f32
    %114 = vector.broadcast %cst_39 : f32 to vector<2x1x128xf32>
    %115 = arith.subf %114, %113 : vector<2x1x128xf32>
    %116 = arith.mulf %112, %115 : vector<2x1x128xf32>
    %cst_40 = arith.constant 0.000000e+00 : f32
    %117 = vector.broadcast %cst_40 : f32 to vector<2x1x128xf32>
    %118 = arith.cmpf oeq, %111, %117 : vector<2x1x128xf32>
    %cst_41 = arith.constant 0x7F800000 : f32
    %119 = vector.broadcast %cst_41 : f32 to vector<2x1x128xf32>
    %120 = arith.select %118, %119, %116 : vector<2x1x128xi1>, vector<2x1x128xf32>
    %cst_42 = arith.constant 1.000000e+00 : f32
    %121 = vector.broadcast %cst_42 : f32 to vector<2x1x128xf32>
    %122 = arith.minimumf %120, %121 : vector<2x1x128xf32>
    %c4_i32 = arith.constant 4 : i32
    %123 = vector.broadcast %122 : vector<2x1x128xf32> to vector<2x8x128xf32>
    %124 = arith.mulf %8, %123 : vector<2x8x128xf32>
    %cst_43 = arith.constant dense<0.000000e+00> : vector<2x8xf32>
    %125 = vector.multi_reduction <add>, %124, %cst_43 [2] : vector<2x8x128xf32> to vector<2x8xf32>
    %126 = vector.shape_cast %125 : vector<2x8xf32> to vector<2x8x1xf32>
    %127 = tpu.reciprocal %126 {approx = true} : vector<2x8x1xf32> -> vector<2x8x1xf32>
    %128 = arith.mulf %126, %127 : vector<2x8x1xf32>
    %cst_44 = arith.constant 2.000000e+00 : f32
    %129 = vector.broadcast %cst_44 : f32 to vector<2x8x1xf32>
    %130 = arith.subf %129, %128 : vector<2x8x1xf32>
    %131 = arith.mulf %127, %130 : vector<2x8x1xf32>
    %cst_45 = arith.constant 0.000000e+00 : f32
    %132 = vector.broadcast %cst_45 : f32 to vector<2x8x1xf32>
    %133 = arith.cmpf oeq, %126, %132 : vector<2x8x1xf32>
    %cst_46 = arith.constant 0x7F800000 : f32
    %134 = vector.broadcast %cst_46 : f32 to vector<2x8x1xf32>
    %135 = arith.select %133, %134, %131 : vector<2x8x1xi1>, vector<2x8x1xf32>
    %136 = vector.broadcast %135 : vector<2x8x1xf32> to vector<2x8x128xf32>
    %137 = arith.mulf %8, %136 : vector<2x8x128xf32>
    %cst_47 = arith.constant dense<0.000000e+00> : vector<2x128xf32>
    %138 = vector.multi_reduction <add>, %137, %cst_47 [1] : vector<2x8x128xf32> to vector<2x128xf32>
    %139 = vector.shape_cast %138 : vector<2x128xf32> to vector<2x1x128xf32>
    %140 = tpu.reciprocal %139 {approx = true} : vector<2x1x128xf32> -> vector<2x1x128xf32>
    %141 = arith.mulf %139, %140 : vector<2x1x128xf32>
    %cst_48 = arith.constant 2.000000e+00 : f32
    %142 = vector.broadcast %cst_48 : f32 to vector<2x1x128xf32>
    %143 = arith.subf %142, %141 : vector<2x1x128xf32>
    %144 = arith.mulf %140, %143 : vector<2x1x128xf32>
    %cst_49 = arith.constant 0.000000e+00 : f32
    %145 = vector.broadcast %cst_49 : f32 to vector<2x1x128xf32>
    %146 = arith.cmpf oeq, %139, %145 : vector<2x1x128xf32>
    %cst_50 = arith.constant 0x7F800000 : f32
    %147 = vector.broadcast %cst_50 : f32 to vector<2x1x128xf32>
    %148 = arith.select %146, %147, %144 : vector<2x1x128xi1>, vector<2x1x128xf32>
    %cst_51 = arith.constant 1.000000e+00 : f32
    %149 = vector.broadcast %cst_51 : f32 to vector<2x1x128xf32>
    %150 = arith.minimumf %148, %149 : vector<2x1x128xf32>
    %c5_i32 = arith.constant 5 : i32
    %151 = vector.broadcast %150 : vector<2x1x128xf32> to vector<2x8x128xf32>
    %152 = arith.mulf %8, %151 : vector<2x8x128xf32>
    %cst_52 = arith.constant dense<0.000000e+00> : vector<2x8xf32>
    %153 = vector.multi_reduction <add>, %152, %cst_52 [2] : vector<2x8x128xf32> to vector<2x8xf32>
    %154 = vector.shape_cast %153 : vector<2x8xf32> to vector<2x8x1xf32>
    %155 = tpu.reciprocal %154 {approx = true} : vector<2x8x1xf32> -> vector<2x8x1xf32>
    %156 = arith.mulf %154, %155 : vector<2x8x1xf32>
    %cst_53 = arith.constant 2.000000e+00 : f32
    %157 = vector.broadcast %cst_53 : f32 to vector<2x8x1xf32>
    %158 = arith.subf %157, %156 : vector<2x8x1xf32>
    %159 = arith.mulf %155, %158 : vector<2x8x1xf32>
    %cst_54 = arith.constant 0.000000e+00 : f32
    %160 = vector.broadcast %cst_54 : f32 to vector<2x8x1xf32>
    %161 = arith.cmpf oeq, %154, %160 : vector<2x8x1xf32>
    %cst_55 = arith.constant 0x7F800000 : f32
    %162 = vector.broadcast %cst_55 : f32 to vector<2x8x1xf32>
    %163 = arith.select %161, %162, %159 : vector<2x8x1xi1>, vector<2x8x1xf32>
    %164 = vector.broadcast %163 : vector<2x8x1xf32> to vector<2x8x128xf32>
    %165 = arith.mulf %8, %164 : vector<2x8x128xf32>
    %cst_56 = arith.constant dense<0.000000e+00> : vector<2x128xf32>
    %166 = vector.multi_reduction <add>, %165, %cst_56 [1] : vector<2x8x128xf32> to vector<2x128xf32>
    %167 = vector.shape_cast %166 : vector<2x128xf32> to vector<2x1x128xf32>
    %168 = tpu.reciprocal %167 {approx = true} : vector<2x1x128xf32> -> vector<2x1x128xf32>
    %169 = arith.mulf %167, %168 : vector<2x1x128xf32>
    %cst_57 = arith.constant 2.000000e+00 : f32
    %170 = vector.broadcast %cst_57 : f32 to vector<2x1x128xf32>
    %171 = arith.subf %170, %169 : vector<2x1x128xf32>
    %172 = arith.mulf %168, %171 : vector<2x1x128xf32>
    %cst_58 = arith.constant 0.000000e+00 : f32
    %173 = vector.broadcast %cst_58 : f32 to vector<2x1x128xf32>
    %174 = arith.cmpf oeq, %167, %173 : vector<2x1x128xf32>
    %cst_59 = arith.constant 0x7F800000 : f32
    %175 = vector.broadcast %cst_59 : f32 to vector<2x1x128xf32>
    %176 = arith.select %174, %175, %172 : vector<2x1x128xi1>, vector<2x1x128xf32>
    %cst_60 = arith.constant 1.000000e+00 : f32
    %177 = vector.broadcast %cst_60 : f32 to vector<2x1x128xf32>
    %178 = arith.minimumf %176, %177 : vector<2x1x128xf32>
    %c6_i32 = arith.constant 6 : i32
    %179 = vector.broadcast %178 : vector<2x1x128xf32> to vector<2x8x128xf32>
    %180 = arith.mulf %8, %179 : vector<2x8x128xf32>
    %cst_61 = arith.constant dense<0.000000e+00> : vector<2x8xf32>
    %181 = vector.multi_reduction <add>, %180, %cst_61 [2] : vector<2x8x128xf32> to vector<2x8xf32>
    %182 = vector.shape_cast %181 : vector<2x8xf32> to vector<2x8x1xf32>
    %183 = tpu.reciprocal %182 {approx = true} : vector<2x8x1xf32> -> vector<2x8x1xf32>
    %184 = arith.mulf %182, %183 : vector<2x8x1xf32>
    %cst_62 = arith.constant 2.000000e+00 : f32
    %185 = vector.broadcast %cst_62 : f32 to vector<2x8x1xf32>
    %186 = arith.subf %185, %184 : vector<2x8x1xf32>
    %187 = arith.mulf %183, %186 : vector<2x8x1xf32>
    %cst_63 = arith.constant 0.000000e+00 : f32
    %188 = vector.broadcast %cst_63 : f32 to vector<2x8x1xf32>
    %189 = arith.cmpf oeq, %182, %188 : vector<2x8x1xf32>
    %cst_64 = arith.constant 0x7F800000 : f32
    %190 = vector.broadcast %cst_64 : f32 to vector<2x8x1xf32>
    %191 = arith.select %189, %190, %187 : vector<2x8x1xi1>, vector<2x8x1xf32>
    %192 = vector.broadcast %191 : vector<2x8x1xf32> to vector<2x8x128xf32>
    %193 = arith.mulf %8, %192 : vector<2x8x128xf32>
    %cst_65 = arith.constant dense<0.000000e+00> : vector<2x128xf32>
    %194 = vector.multi_reduction <add>, %193, %cst_65 [1] : vector<2x8x128xf32> to vector<2x128xf32>
    %195 = vector.shape_cast %194 : vector<2x128xf32> to vector<2x1x128xf32>
    %196 = tpu.reciprocal %195 {approx = true} : vector<2x1x128xf32> -> vector<2x1x128xf32>
    %197 = arith.mulf %195, %196 : vector<2x1x128xf32>
    %cst_66 = arith.constant 2.000000e+00 : f32
    %198 = vector.broadcast %cst_66 : f32 to vector<2x1x128xf32>
    %199 = arith.subf %198, %197 : vector<2x1x128xf32>
    %200 = arith.mulf %196, %199 : vector<2x1x128xf32>
    %cst_67 = arith.constant 0.000000e+00 : f32
    %201 = vector.broadcast %cst_67 : f32 to vector<2x1x128xf32>
    %202 = arith.cmpf oeq, %195, %201 : vector<2x1x128xf32>
    %cst_68 = arith.constant 0x7F800000 : f32
    %203 = vector.broadcast %cst_68 : f32 to vector<2x1x128xf32>
    %204 = arith.select %202, %203, %200 : vector<2x1x128xi1>, vector<2x1x128xf32>
    %cst_69 = arith.constant 1.000000e+00 : f32
    %205 = vector.broadcast %cst_69 : f32 to vector<2x1x128xf32>
    %206 = arith.minimumf %204, %205 : vector<2x1x128xf32>
    %c7_i32 = arith.constant 7 : i32
    %207 = vector.broadcast %206 : vector<2x1x128xf32> to vector<2x8x128xf32>
    %208 = arith.mulf %8, %207 : vector<2x8x128xf32>
    %cst_70 = arith.constant dense<0.000000e+00> : vector<2x8xf32>
    %209 = vector.multi_reduction <add>, %208, %cst_70 [2] : vector<2x8x128xf32> to vector<2x8xf32>
    %210 = vector.shape_cast %209 : vector<2x8xf32> to vector<2x8x1xf32>
    %211 = tpu.reciprocal %210 {approx = true} : vector<2x8x1xf32> -> vector<2x8x1xf32>
    %212 = arith.mulf %210, %211 : vector<2x8x1xf32>
    %cst_71 = arith.constant 2.000000e+00 : f32
    %213 = vector.broadcast %cst_71 : f32 to vector<2x8x1xf32>
    %214 = arith.subf %213, %212 : vector<2x8x1xf32>
    %215 = arith.mulf %211, %214 : vector<2x8x1xf32>
    %cst_72 = arith.constant 0.000000e+00 : f32
    %216 = vector.broadcast %cst_72 : f32 to vector<2x8x1xf32>
    %217 = arith.cmpf oeq, %210, %216 : vector<2x8x1xf32>
    %cst_73 = arith.constant 0x7F800000 : f32
    %218 = vector.broadcast %cst_73 : f32 to vector<2x8x1xf32>
    %219 = arith.select %217, %218, %215 : vector<2x8x1xi1>, vector<2x8x1xf32>
    %220 = vector.broadcast %219 : vector<2x8x1xf32> to vector<2x8x128xf32>
    %221 = arith.mulf %8, %220 : vector<2x8x128xf32>
    %cst_74 = arith.constant dense<0.000000e+00> : vector<2x128xf32>
    %222 = vector.multi_reduction <add>, %221, %cst_74 [1] : vector<2x8x128xf32> to vector<2x128xf32>
    %223 = vector.shape_cast %222 : vector<2x128xf32> to vector<2x1x128xf32>
    %224 = tpu.reciprocal %223 {approx = true} : vector<2x1x128xf32> -> vector<2x1x128xf32>
    %225 = arith.mulf %223, %224 : vector<2x1x128xf32>
    %cst_75 = arith.constant 2.000000e+00 : f32
    %226 = vector.broadcast %cst_75 : f32 to vector<2x1x128xf32>
    %227 = arith.subf %226, %225 : vector<2x1x128xf32>
    %228 = arith.mulf %224, %227 : vector<2x1x128xf32>
    %cst_76 = arith.constant 0.000000e+00 : f32
    %229 = vector.broadcast %cst_76 : f32 to vector<2x1x128xf32>
    %230 = arith.cmpf oeq, %223, %229 : vector<2x1x128xf32>
    %cst_77 = arith.constant 0x7F800000 : f32
    %231 = vector.broadcast %cst_77 : f32 to vector<2x1x128xf32>
    %232 = arith.select %230, %231, %228 : vector<2x1x128xi1>, vector<2x1x128xf32>
    %cst_78 = arith.constant 1.000000e+00 : f32
    %233 = vector.broadcast %cst_78 : f32 to vector<2x1x128xf32>
    %234 = arith.minimumf %232, %233 : vector<2x1x128xf32>
    %c8_i32 = arith.constant 8 : i32
    %235 = vector.broadcast %234 : vector<2x1x128xf32> to vector<2x8x128xf32>
    %236 = arith.mulf %8, %235 : vector<2x8x128xf32>
    %cst_79 = arith.constant dense<0.000000e+00> : vector<2x8xf32>
    %237 = vector.multi_reduction <add>, %236, %cst_79 [2] : vector<2x8x128xf32> to vector<2x8xf32>
    %238 = vector.shape_cast %237 : vector<2x8xf32> to vector<2x8x1xf32>
    %239 = tpu.reciprocal %238 {approx = true} : vector<2x8x1xf32> -> vector<2x8x1xf32>
    %240 = arith.mulf %238, %239 : vector<2x8x1xf32>
    %cst_80 = arith.constant 2.000000e+00 : f32
    %241 = vector.broadcast %cst_80 : f32 to vector<2x8x1xf32>
    %242 = arith.subf %241, %240 : vector<2x8x1xf32>
    %243 = arith.mulf %239, %242 : vector<2x8x1xf32>
    %cst_81 = arith.constant 0.000000e+00 : f32
    %244 = vector.broadcast %cst_81 : f32 to vector<2x8x1xf32>
    %245 = arith.cmpf oeq, %238, %244 : vector<2x8x1xf32>
    %cst_82 = arith.constant 0x7F800000 : f32
    %246 = vector.broadcast %cst_82 : f32 to vector<2x8x1xf32>
    %247 = arith.select %245, %246, %243 : vector<2x8x1xi1>, vector<2x8x1xf32>
    %248 = vector.broadcast %247 : vector<2x8x1xf32> to vector<2x8x128xf32>
    %249 = arith.mulf %8, %248 : vector<2x8x128xf32>
    %cst_83 = arith.constant dense<0.000000e+00> : vector<2x128xf32>
    %250 = vector.multi_reduction <add>, %249, %cst_83 [1] : vector<2x8x128xf32> to vector<2x128xf32>
    %251 = vector.shape_cast %250 : vector<2x128xf32> to vector<2x1x128xf32>
    %252 = tpu.reciprocal %251 {approx = true} : vector<2x1x128xf32> -> vector<2x1x128xf32>
    %253 = arith.mulf %251, %252 : vector<2x1x128xf32>
    %cst_84 = arith.constant 2.000000e+00 : f32
    %254 = vector.broadcast %cst_84 : f32 to vector<2x1x128xf32>
    %255 = arith.subf %254, %253 : vector<2x1x128xf32>
    %256 = arith.mulf %252, %255 : vector<2x1x128xf32>
    %cst_85 = arith.constant 0.000000e+00 : f32
    %257 = vector.broadcast %cst_85 : f32 to vector<2x1x128xf32>
    %258 = arith.cmpf oeq, %251, %257 : vector<2x1x128xf32>
    %cst_86 = arith.constant 0x7F800000 : f32
    %259 = vector.broadcast %cst_86 : f32 to vector<2x1x128xf32>
    %260 = arith.select %258, %259, %256 : vector<2x1x128xi1>, vector<2x1x128xf32>
    %cst_87 = arith.constant 1.000000e+00 : f32
    %261 = vector.broadcast %cst_87 : f32 to vector<2x1x128xf32>
    %262 = arith.minimumf %260, %261 : vector<2x1x128xf32>
    %c9_i32 = arith.constant 9 : i32
    %263 = vector.broadcast %262 : vector<2x1x128xf32> to vector<2x8x128xf32>
    %264 = arith.mulf %8, %263 : vector<2x8x128xf32>
    %cst_88 = arith.constant dense<0.000000e+00> : vector<2x8xf32>
    %265 = vector.multi_reduction <add>, %264, %cst_88 [2] : vector<2x8x128xf32> to vector<2x8xf32>
    %266 = vector.shape_cast %265 : vector<2x8xf32> to vector<2x8x1xf32>
    %267 = tpu.reciprocal %266 {approx = true} : vector<2x8x1xf32> -> vector<2x8x1xf32>
    %268 = arith.mulf %266, %267 : vector<2x8x1xf32>
    %cst_89 = arith.constant 2.000000e+00 : f32
    %269 = vector.broadcast %cst_89 : f32 to vector<2x8x1xf32>
    %270 = arith.subf %269, %268 : vector<2x8x1xf32>
    %271 = arith.mulf %267, %270 : vector<2x8x1xf32>
    %cst_90 = arith.constant 0.000000e+00 : f32
    %272 = vector.broadcast %cst_90 : f32 to vector<2x8x1xf32>
    %273 = arith.cmpf oeq, %266, %272 : vector<2x8x1xf32>
    %cst_91 = arith.constant 0x7F800000 : f32
    %274 = vector.broadcast %cst_91 : f32 to vector<2x8x1xf32>
    %275 = arith.select %273, %274, %271 : vector<2x8x1xi1>, vector<2x8x1xf32>
    %276 = vector.broadcast %275 : vector<2x8x1xf32> to vector<2x8x128xf32>
    %277 = arith.mulf %8, %276 : vector<2x8x128xf32>
    %cst_92 = arith.constant dense<0.000000e+00> : vector<2x128xf32>
    %278 = vector.multi_reduction <add>, %277, %cst_92 [1] : vector<2x8x128xf32> to vector<2x128xf32>
    %279 = vector.shape_cast %278 : vector<2x128xf32> to vector<2x1x128xf32>
    %280 = tpu.reciprocal %279 {approx = true} : vector<2x1x128xf32> -> vector<2x1x128xf32>
    %281 = arith.mulf %279, %280 : vector<2x1x128xf32>
    %cst_93 = arith.constant 2.000000e+00 : f32
    %282 = vector.broadcast %cst_93 : f32 to vector<2x1x128xf32>
    %283 = arith.subf %282, %281 : vector<2x1x128xf32>
    %284 = arith.mulf %280, %283 : vector<2x1x128xf32>
    %cst_94 = arith.constant 0.000000e+00 : f32
    %285 = vector.broadcast %cst_94 : f32 to vector<2x1x128xf32>
    %286 = arith.cmpf oeq, %279, %285 : vector<2x1x128xf32>
    %cst_95 = arith.constant 0x7F800000 : f32
    %287 = vector.broadcast %cst_95 : f32 to vector<2x1x128xf32>
    %288 = arith.select %286, %287, %284 : vector<2x1x128xi1>, vector<2x1x128xf32>
    %cst_96 = arith.constant 1.000000e+00 : f32
    %289 = vector.broadcast %cst_96 : f32 to vector<2x1x128xf32>
    %290 = arith.minimumf %288, %289 : vector<2x1x128xf32>
    %c10_i32 = arith.constant 10 : i32
    %291 = vector.broadcast %290 : vector<2x1x128xf32> to vector<2x8x128xf32>
    %292 = arith.mulf %8, %291 : vector<2x8x128xf32>
    %cst_97 = arith.constant dense<0.000000e+00> : vector<2x8xf32>
    %293 = vector.multi_reduction <add>, %292, %cst_97 [2] : vector<2x8x128xf32> to vector<2x8xf32>
    %294 = vector.shape_cast %293 : vector<2x8xf32> to vector<2x8x1xf32>
    %295 = tpu.reciprocal %294 {approx = true} : vector<2x8x1xf32> -> vector<2x8x1xf32>
    %296 = arith.mulf %294, %295 : vector<2x8x1xf32>
    %cst_98 = arith.constant 2.000000e+00 : f32
    %297 = vector.broadcast %cst_98 : f32 to vector<2x8x1xf32>
    %298 = arith.subf %297, %296 : vector<2x8x1xf32>
    %299 = arith.mulf %295, %298 : vector<2x8x1xf32>
    %cst_99 = arith.constant 0.000000e+00 : f32
    %300 = vector.broadcast %cst_99 : f32 to vector<2x8x1xf32>
    %301 = arith.cmpf oeq, %294, %300 : vector<2x8x1xf32>
    %cst_100 = arith.constant 0x7F800000 : f32
    %302 = vector.broadcast %cst_100 : f32 to vector<2x8x1xf32>
    %303 = arith.select %301, %302, %299 : vector<2x8x1xi1>, vector<2x8x1xf32>
    %304 = vector.broadcast %303 : vector<2x8x1xf32> to vector<2x8x128xf32>
    %305 = arith.mulf %8, %304 : vector<2x8x128xf32>
    %cst_101 = arith.constant dense<0.000000e+00> : vector<2x128xf32>
    %306 = vector.multi_reduction <add>, %305, %cst_101 [1] : vector<2x8x128xf32> to vector<2x128xf32>
    %307 = vector.shape_cast %306 : vector<2x128xf32> to vector<2x1x128xf32>
    %308 = tpu.reciprocal %307 {approx = true} : vector<2x1x128xf32> -> vector<2x1x128xf32>
    %309 = arith.mulf %307, %308 : vector<2x1x128xf32>
    %cst_102 = arith.constant 2.000000e+00 : f32
    %310 = vector.broadcast %cst_102 : f32 to vector<2x1x128xf32>
    %311 = arith.subf %310, %309 : vector<2x1x128xf32>
    %312 = arith.mulf %308, %311 : vector<2x1x128xf32>
    %cst_103 = arith.constant 0.000000e+00 : f32
    %313 = vector.broadcast %cst_103 : f32 to vector<2x1x128xf32>
    %314 = arith.cmpf oeq, %307, %313 : vector<2x1x128xf32>
    %cst_104 = arith.constant 0x7F800000 : f32
    %315 = vector.broadcast %cst_104 : f32 to vector<2x1x128xf32>
    %316 = arith.select %314, %315, %312 : vector<2x1x128xi1>, vector<2x1x128xf32>
    %cst_105 = arith.constant 1.000000e+00 : f32
    %317 = vector.broadcast %cst_105 : f32 to vector<2x1x128xf32>
    %318 = arith.minimumf %316, %317 : vector<2x1x128xf32>
    %c11_i32 = arith.constant 11 : i32
    %319 = vector.broadcast %318 : vector<2x1x128xf32> to vector<2x8x128xf32>
    %320 = arith.mulf %8, %319 : vector<2x8x128xf32>
    %cst_106 = arith.constant dense<0.000000e+00> : vector<2x8xf32>
    %321 = vector.multi_reduction <add>, %320, %cst_106 [2] : vector<2x8x128xf32> to vector<2x8xf32>
    %322 = vector.shape_cast %321 : vector<2x8xf32> to vector<2x8x1xf32>
    %323 = tpu.reciprocal %322 {approx = true} : vector<2x8x1xf32> -> vector<2x8x1xf32>
    %324 = arith.mulf %322, %323 : vector<2x8x1xf32>
    %cst_107 = arith.constant 2.000000e+00 : f32
    %325 = vector.broadcast %cst_107 : f32 to vector<2x8x1xf32>
    %326 = arith.subf %325, %324 : vector<2x8x1xf32>
    %327 = arith.mulf %323, %326 : vector<2x8x1xf32>
    %cst_108 = arith.constant 0.000000e+00 : f32
    %328 = vector.broadcast %cst_108 : f32 to vector<2x8x1xf32>
    %329 = arith.cmpf oeq, %322, %328 : vector<2x8x1xf32>
    %cst_109 = arith.constant 0x7F800000 : f32
    %330 = vector.broadcast %cst_109 : f32 to vector<2x8x1xf32>
    %331 = arith.select %329, %330, %327 : vector<2x8x1xi1>, vector<2x8x1xf32>
    %332 = vector.broadcast %331 : vector<2x8x1xf32> to vector<2x8x128xf32>
    %333 = arith.mulf %8, %332 : vector<2x8x128xf32>
    %cst_110 = arith.constant dense<0.000000e+00> : vector<2x128xf32>
    %334 = vector.multi_reduction <add>, %333, %cst_110 [1] : vector<2x8x128xf32> to vector<2x128xf32>
    %335 = vector.shape_cast %334 : vector<2x128xf32> to vector<2x1x128xf32>
    %336 = tpu.reciprocal %335 {approx = true} : vector<2x1x128xf32> -> vector<2x1x128xf32>
    %337 = arith.mulf %335, %336 : vector<2x1x128xf32>
    %cst_111 = arith.constant 2.000000e+00 : f32
    %338 = vector.broadcast %cst_111 : f32 to vector<2x1x128xf32>
    %339 = arith.subf %338, %337 : vector<2x1x128xf32>
    %340 = arith.mulf %336, %339 : vector<2x1x128xf32>
    %cst_112 = arith.constant 0.000000e+00 : f32
    %341 = vector.broadcast %cst_112 : f32 to vector<2x1x128xf32>
    %342 = arith.cmpf oeq, %335, %341 : vector<2x1x128xf32>
    %cst_113 = arith.constant 0x7F800000 : f32
    %343 = vector.broadcast %cst_113 : f32 to vector<2x1x128xf32>
    %344 = arith.select %342, %343, %340 : vector<2x1x128xi1>, vector<2x1x128xf32>
    %cst_114 = arith.constant 1.000000e+00 : f32
    %345 = vector.broadcast %cst_114 : f32 to vector<2x1x128xf32>
    %346 = arith.minimumf %344, %345 : vector<2x1x128xf32>
    %c12_i32 = arith.constant 12 : i32
    %347 = vector.broadcast %346 : vector<2x1x128xf32> to vector<2x8x128xf32>
    %348 = arith.mulf %8, %347 : vector<2x8x128xf32>
    %cst_115 = arith.constant dense<0.000000e+00> : vector<2x8xf32>
    %349 = vector.multi_reduction <add>, %348, %cst_115 [2] : vector<2x8x128xf32> to vector<2x8xf32>
    %350 = vector.shape_cast %349 : vector<2x8xf32> to vector<2x8x1xf32>
    %351 = tpu.reciprocal %350 {approx = true} : vector<2x8x1xf32> -> vector<2x8x1xf32>
    %352 = arith.mulf %350, %351 : vector<2x8x1xf32>
    %cst_116 = arith.constant 2.000000e+00 : f32
    %353 = vector.broadcast %cst_116 : f32 to vector<2x8x1xf32>
    %354 = arith.subf %353, %352 : vector<2x8x1xf32>
    %355 = arith.mulf %351, %354 : vector<2x8x1xf32>
    %cst_117 = arith.constant 0.000000e+00 : f32
    %356 = vector.broadcast %cst_117 : f32 to vector<2x8x1xf32>
    %357 = arith.cmpf oeq, %350, %356 : vector<2x8x1xf32>
    %cst_118 = arith.constant 0x7F800000 : f32
    %358 = vector.broadcast %cst_118 : f32 to vector<2x8x1xf32>
    %359 = arith.select %357, %358, %355 : vector<2x8x1xi1>, vector<2x8x1xf32>
    %360 = vector.broadcast %359 : vector<2x8x1xf32> to vector<2x8x128xf32>
    %361 = arith.mulf %8, %360 : vector<2x8x128xf32>
    %cst_119 = arith.constant dense<0.000000e+00> : vector<2x128xf32>
    %362 = vector.multi_reduction <add>, %361, %cst_119 [1] : vector<2x8x128xf32> to vector<2x128xf32>
    %363 = vector.shape_cast %362 : vector<2x128xf32> to vector<2x1x128xf32>
    %364 = tpu.reciprocal %363 {approx = true} : vector<2x1x128xf32> -> vector<2x1x128xf32>
    %365 = arith.mulf %363, %364 : vector<2x1x128xf32>
    %cst_120 = arith.constant 2.000000e+00 : f32
    %366 = vector.broadcast %cst_120 : f32 to vector<2x1x128xf32>
    %367 = arith.subf %366, %365 : vector<2x1x128xf32>
    %368 = arith.mulf %364, %367 : vector<2x1x128xf32>
    %cst_121 = arith.constant 0.000000e+00 : f32
    %369 = vector.broadcast %cst_121 : f32 to vector<2x1x128xf32>
    %370 = arith.cmpf oeq, %363, %369 : vector<2x1x128xf32>
    %cst_122 = arith.constant 0x7F800000 : f32
    %371 = vector.broadcast %cst_122 : f32 to vector<2x1x128xf32>
    %372 = arith.select %370, %371, %368 : vector<2x1x128xi1>, vector<2x1x128xf32>
    %cst_123 = arith.constant 1.000000e+00 : f32
    %373 = vector.broadcast %cst_123 : f32 to vector<2x1x128xf32>
    %374 = arith.minimumf %372, %373 : vector<2x1x128xf32>
    %c13_i32 = arith.constant 13 : i32
    %375 = vector.broadcast %374 : vector<2x1x128xf32> to vector<2x8x128xf32>
    %376 = arith.mulf %8, %375 : vector<2x8x128xf32>
    %cst_124 = arith.constant dense<0.000000e+00> : vector<2x8xf32>
    %377 = vector.multi_reduction <add>, %376, %cst_124 [2] : vector<2x8x128xf32> to vector<2x8xf32>
    %378 = vector.shape_cast %377 : vector<2x8xf32> to vector<2x8x1xf32>
    %379 = tpu.reciprocal %378 {approx = true} : vector<2x8x1xf32> -> vector<2x8x1xf32>
    %380 = arith.mulf %378, %379 : vector<2x8x1xf32>
    %cst_125 = arith.constant 2.000000e+00 : f32
    %381 = vector.broadcast %cst_125 : f32 to vector<2x8x1xf32>
    %382 = arith.subf %381, %380 : vector<2x8x1xf32>
    %383 = arith.mulf %379, %382 : vector<2x8x1xf32>
    %cst_126 = arith.constant 0.000000e+00 : f32
    %384 = vector.broadcast %cst_126 : f32 to vector<2x8x1xf32>
    %385 = arith.cmpf oeq, %378, %384 : vector<2x8x1xf32>
    %cst_127 = arith.constant 0x7F800000 : f32
    %386 = vector.broadcast %cst_127 : f32 to vector<2x8x1xf32>
    %387 = arith.select %385, %386, %383 : vector<2x8x1xi1>, vector<2x8x1xf32>
    %388 = vector.broadcast %387 : vector<2x8x1xf32> to vector<2x8x128xf32>
    %389 = arith.mulf %8, %388 : vector<2x8x128xf32>
    %cst_128 = arith.constant dense<0.000000e+00> : vector<2x128xf32>
    %390 = vector.multi_reduction <add>, %389, %cst_128 [1] : vector<2x8x128xf32> to vector<2x128xf32>
    %391 = vector.shape_cast %390 : vector<2x128xf32> to vector<2x1x128xf32>
    %392 = tpu.reciprocal %391 {approx = true} : vector<2x1x128xf32> -> vector<2x1x128xf32>
    %393 = arith.mulf %391, %392 : vector<2x1x128xf32>
    %cst_129 = arith.constant 2.000000e+00 : f32
    %394 = vector.broadcast %cst_129 : f32 to vector<2x1x128xf32>
    %395 = arith.subf %394, %393 : vector<2x1x128xf32>
    %396 = arith.mulf %392, %395 : vector<2x1x128xf32>
    %cst_130 = arith.constant 0.000000e+00 : f32
    %397 = vector.broadcast %cst_130 : f32 to vector<2x1x128xf32>
    %398 = arith.cmpf oeq, %391, %397 : vector<2x1x128xf32>
    %cst_131 = arith.constant 0x7F800000 : f32
    %399 = vector.broadcast %cst_131 : f32 to vector<2x1x128xf32>
    %400 = arith.select %398, %399, %396 : vector<2x1x128xi1>, vector<2x1x128xf32>
    %cst_132 = arith.constant 1.000000e+00 : f32
    %401 = vector.broadcast %cst_132 : f32 to vector<2x1x128xf32>
    %402 = arith.minimumf %400, %401 : vector<2x1x128xf32>
    %c14_i32 = arith.constant 14 : i32
    %403 = vector.broadcast %402 : vector<2x1x128xf32> to vector<2x8x128xf32>
    %404 = arith.mulf %8, %403 : vector<2x8x128xf32>
    %cst_133 = arith.constant dense<0.000000e+00> : vector<2x8xf32>
    %405 = vector.multi_reduction <add>, %404, %cst_133 [2] : vector<2x8x128xf32> to vector<2x8xf32>
    %406 = vector.shape_cast %405 : vector<2x8xf32> to vector<2x8x1xf32>
    %407 = tpu.reciprocal %406 {approx = true} : vector<2x8x1xf32> -> vector<2x8x1xf32>
    %408 = arith.mulf %406, %407 : vector<2x8x1xf32>
    %cst_134 = arith.constant 2.000000e+00 : f32
    %409 = vector.broadcast %cst_134 : f32 to vector<2x8x1xf32>
    %410 = arith.subf %409, %408 : vector<2x8x1xf32>
    %411 = arith.mulf %407, %410 : vector<2x8x1xf32>
    %cst_135 = arith.constant 0.000000e+00 : f32
    %412 = vector.broadcast %cst_135 : f32 to vector<2x8x1xf32>
    %413 = arith.cmpf oeq, %406, %412 : vector<2x8x1xf32>
    %cst_136 = arith.constant 0x7F800000 : f32
    %414 = vector.broadcast %cst_136 : f32 to vector<2x8x1xf32>
    %415 = arith.select %413, %414, %411 : vector<2x8x1xi1>, vector<2x8x1xf32>
    %416 = vector.broadcast %415 : vector<2x8x1xf32> to vector<2x8x128xf32>
    %417 = arith.mulf %8, %416 : vector<2x8x128xf32>
    %cst_137 = arith.constant dense<0.000000e+00> : vector<2x128xf32>
    %418 = vector.multi_reduction <add>, %417, %cst_137 [1] : vector<2x8x128xf32> to vector<2x128xf32>
    %419 = vector.shape_cast %418 : vector<2x128xf32> to vector<2x1x128xf32>
    %420 = tpu.reciprocal %419 {approx = true} : vector<2x1x128xf32> -> vector<2x1x128xf32>
    %421 = arith.mulf %419, %420 : vector<2x1x128xf32>
    %cst_138 = arith.constant 2.000000e+00 : f32
    %422 = vector.broadcast %cst_138 : f32 to vector<2x1x128xf32>
    %423 = arith.subf %422, %421 : vector<2x1x128xf32>
    %424 = arith.mulf %420, %423 : vector<2x1x128xf32>
    %cst_139 = arith.constant 0.000000e+00 : f32
    %425 = vector.broadcast %cst_139 : f32 to vector<2x1x128xf32>
    %426 = arith.cmpf oeq, %419, %425 : vector<2x1x128xf32>
    %cst_140 = arith.constant 0x7F800000 : f32
    %427 = vector.broadcast %cst_140 : f32 to vector<2x1x128xf32>
    %428 = arith.select %426, %427, %424 : vector<2x1x128xi1>, vector<2x1x128xf32>
    %cst_141 = arith.constant 1.000000e+00 : f32
    %429 = vector.broadcast %cst_141 : f32 to vector<2x1x128xf32>
    %430 = arith.minimumf %428, %429 : vector<2x1x128xf32>
    %c15_i32 = arith.constant 15 : i32
    %431 = vector.broadcast %430 : vector<2x1x128xf32> to vector<2x8x128xf32>
    %432 = arith.mulf %8, %431 : vector<2x8x128xf32>
    %cst_142 = arith.constant dense<0.000000e+00> : vector<2x8xf32>
    %433 = vector.multi_reduction <add>, %432, %cst_142 [2] : vector<2x8x128xf32> to vector<2x8xf32>
    %434 = vector.shape_cast %433 : vector<2x8xf32> to vector<2x8x1xf32>
    %435 = tpu.reciprocal %434 {approx = true} : vector<2x8x1xf32> -> vector<2x8x1xf32>
    %436 = arith.mulf %434, %435 : vector<2x8x1xf32>
    %cst_143 = arith.constant 2.000000e+00 : f32
    %437 = vector.broadcast %cst_143 : f32 to vector<2x8x1xf32>
    %438 = arith.subf %437, %436 : vector<2x8x1xf32>
    %439 = arith.mulf %435, %438 : vector<2x8x1xf32>
    %cst_144 = arith.constant 0.000000e+00 : f32
    %440 = vector.broadcast %cst_144 : f32 to vector<2x8x1xf32>
    %441 = arith.cmpf oeq, %434, %440 : vector<2x8x1xf32>
    %cst_145 = arith.constant 0x7F800000 : f32
    %442 = vector.broadcast %cst_145 : f32 to vector<2x8x1xf32>
    %443 = arith.select %441, %442, %439 : vector<2x8x1xi1>, vector<2x8x1xf32>
    %444 = vector.broadcast %443 : vector<2x8x1xf32> to vector<2x8x128xf32>
    %445 = arith.mulf %8, %444 : vector<2x8x128xf32>
    %cst_146 = arith.constant dense<0.000000e+00> : vector<2x128xf32>
    %446 = vector.multi_reduction <add>, %445, %cst_146 [1] : vector<2x8x128xf32> to vector<2x128xf32>
    %447 = vector.shape_cast %446 : vector<2x128xf32> to vector<2x1x128xf32>
    %448 = tpu.reciprocal %447 {approx = true} : vector<2x1x128xf32> -> vector<2x1x128xf32>
    %449 = arith.mulf %447, %448 : vector<2x1x128xf32>
    %cst_147 = arith.constant 2.000000e+00 : f32
    %450 = vector.broadcast %cst_147 : f32 to vector<2x1x128xf32>
    %451 = arith.subf %450, %449 : vector<2x1x128xf32>
    %452 = arith.mulf %448, %451 : vector<2x1x128xf32>
    %cst_148 = arith.constant 0.000000e+00 : f32
    %453 = vector.broadcast %cst_148 : f32 to vector<2x1x128xf32>
    %454 = arith.cmpf oeq, %447, %453 : vector<2x1x128xf32>
    %cst_149 = arith.constant 0x7F800000 : f32
    %455 = vector.broadcast %cst_149 : f32 to vector<2x1x128xf32>
    %456 = arith.select %454, %455, %452 : vector<2x1x128xi1>, vector<2x1x128xf32>
    %cst_150 = arith.constant 1.000000e+00 : f32
    %457 = vector.broadcast %cst_150 : f32 to vector<2x1x128xf32>
    %458 = arith.minimumf %456, %457 : vector<2x1x128xf32>
    %c16_i32 = arith.constant 16 : i32
    %459 = vector.broadcast %458 : vector<2x1x128xf32> to vector<2x8x128xf32>
    %460 = arith.mulf %8, %459 : vector<2x8x128xf32>
    %cst_151 = arith.constant dense<0.000000e+00> : vector<2x8xf32>
    %461 = vector.multi_reduction <add>, %460, %cst_151 [2] : vector<2x8x128xf32> to vector<2x8xf32>
    %462 = vector.shape_cast %461 : vector<2x8xf32> to vector<2x8x1xf32>
    %463 = tpu.reciprocal %462 {approx = true} : vector<2x8x1xf32> -> vector<2x8x1xf32>
    %464 = arith.mulf %462, %463 : vector<2x8x1xf32>
    %cst_152 = arith.constant 2.000000e+00 : f32
    %465 = vector.broadcast %cst_152 : f32 to vector<2x8x1xf32>
    %466 = arith.subf %465, %464 : vector<2x8x1xf32>
    %467 = arith.mulf %463, %466 : vector<2x8x1xf32>
    %cst_153 = arith.constant 0.000000e+00 : f32
    %468 = vector.broadcast %cst_153 : f32 to vector<2x8x1xf32>
    %469 = arith.cmpf oeq, %462, %468 : vector<2x8x1xf32>
    %cst_154 = arith.constant 0x7F800000 : f32
    %470 = vector.broadcast %cst_154 : f32 to vector<2x8x1xf32>
    %471 = arith.select %469, %470, %467 : vector<2x8x1xi1>, vector<2x8x1xf32>
    %472 = vector.broadcast %471 : vector<2x8x1xf32> to vector<2x8x128xf32>
    %473 = arith.mulf %8, %472 : vector<2x8x128xf32>
    %cst_155 = arith.constant dense<0.000000e+00> : vector<2x128xf32>
    %474 = vector.multi_reduction <add>, %473, %cst_155 [1] : vector<2x8x128xf32> to vector<2x128xf32>
    %475 = vector.shape_cast %474 : vector<2x128xf32> to vector<2x1x128xf32>
    %476 = tpu.reciprocal %475 {approx = true} : vector<2x1x128xf32> -> vector<2x1x128xf32>
    %477 = arith.mulf %475, %476 : vector<2x1x128xf32>
    %cst_156 = arith.constant 2.000000e+00 : f32
    %478 = vector.broadcast %cst_156 : f32 to vector<2x1x128xf32>
    %479 = arith.subf %478, %477 : vector<2x1x128xf32>
    %480 = arith.mulf %476, %479 : vector<2x1x128xf32>
    %cst_157 = arith.constant 0.000000e+00 : f32
    %481 = vector.broadcast %cst_157 : f32 to vector<2x1x128xf32>
    %482 = arith.cmpf oeq, %475, %481 : vector<2x1x128xf32>
    %cst_158 = arith.constant 0x7F800000 : f32
    %483 = vector.broadcast %cst_158 : f32 to vector<2x1x128xf32>
    %484 = arith.select %482, %483, %480 : vector<2x1x128xi1>, vector<2x1x128xf32>
    %cst_159 = arith.constant 1.000000e+00 : f32
    %485 = vector.broadcast %cst_159 : f32 to vector<2x1x128xf32>
    %486 = arith.minimumf %484, %485 : vector<2x1x128xf32>
    %c17_i32 = arith.constant 17 : i32
    %487 = vector.broadcast %486 : vector<2x1x128xf32> to vector<2x8x128xf32>
    %488 = arith.mulf %8, %487 : vector<2x8x128xf32>
    %cst_160 = arith.constant dense<0.000000e+00> : vector<2x8xf32>
    %489 = vector.multi_reduction <add>, %488, %cst_160 [2] : vector<2x8x128xf32> to vector<2x8xf32>
    %490 = vector.shape_cast %489 : vector<2x8xf32> to vector<2x8x1xf32>
    %491 = tpu.reciprocal %490 {approx = true} : vector<2x8x1xf32> -> vector<2x8x1xf32>
    %492 = arith.mulf %490, %491 : vector<2x8x1xf32>
    %cst_161 = arith.constant 2.000000e+00 : f32
    %493 = vector.broadcast %cst_161 : f32 to vector<2x8x1xf32>
    %494 = arith.subf %493, %492 : vector<2x8x1xf32>
    %495 = arith.mulf %491, %494 : vector<2x8x1xf32>
    %cst_162 = arith.constant 0.000000e+00 : f32
    %496 = vector.broadcast %cst_162 : f32 to vector<2x8x1xf32>
    %497 = arith.cmpf oeq, %490, %496 : vector<2x8x1xf32>
    %cst_163 = arith.constant 0x7F800000 : f32
    %498 = vector.broadcast %cst_163 : f32 to vector<2x8x1xf32>
    %499 = arith.select %497, %498, %495 : vector<2x8x1xi1>, vector<2x8x1xf32>
    %500 = vector.broadcast %499 : vector<2x8x1xf32> to vector<2x8x128xf32>
    %501 = arith.mulf %8, %500 : vector<2x8x128xf32>
    %cst_164 = arith.constant dense<0.000000e+00> : vector<2x128xf32>
    %502 = vector.multi_reduction <add>, %501, %cst_164 [1] : vector<2x8x128xf32> to vector<2x128xf32>
    %503 = vector.shape_cast %502 : vector<2x128xf32> to vector<2x1x128xf32>
    %504 = tpu.reciprocal %503 {approx = true} : vector<2x1x128xf32> -> vector<2x1x128xf32>
    %505 = arith.mulf %503, %504 : vector<2x1x128xf32>
    %cst_165 = arith.constant 2.000000e+00 : f32
    %506 = vector.broadcast %cst_165 : f32 to vector<2x1x128xf32>
    %507 = arith.subf %506, %505 : vector<2x1x128xf32>
    %508 = arith.mulf %504, %507 : vector<2x1x128xf32>
    %cst_166 = arith.constant 0.000000e+00 : f32
    %509 = vector.broadcast %cst_166 : f32 to vector<2x1x128xf32>
    %510 = arith.cmpf oeq, %503, %509 : vector<2x1x128xf32>
    %cst_167 = arith.constant 0x7F800000 : f32
    %511 = vector.broadcast %cst_167 : f32 to vector<2x1x128xf32>
    %512 = arith.select %510, %511, %508 : vector<2x1x128xi1>, vector<2x1x128xf32>
    %cst_168 = arith.constant 1.000000e+00 : f32
    %513 = vector.broadcast %cst_168 : f32 to vector<2x1x128xf32>
    %514 = arith.minimumf %512, %513 : vector<2x1x128xf32>
    %c18_i32 = arith.constant 18 : i32
    %515 = vector.broadcast %514 : vector<2x1x128xf32> to vector<2x8x128xf32>
    %516 = arith.mulf %8, %515 : vector<2x8x128xf32>
    %cst_169 = arith.constant dense<0.000000e+00> : vector<2x8xf32>
    %517 = vector.multi_reduction <add>, %516, %cst_169 [2] : vector<2x8x128xf32> to vector<2x8xf32>
    %518 = vector.shape_cast %517 : vector<2x8xf32> to vector<2x8x1xf32>
    %519 = tpu.reciprocal %518 {approx = true} : vector<2x8x1xf32> -> vector<2x8x1xf32>
    %520 = arith.mulf %518, %519 : vector<2x8x1xf32>
    %cst_170 = arith.constant 2.000000e+00 : f32
    %521 = vector.broadcast %cst_170 : f32 to vector<2x8x1xf32>
    %522 = arith.subf %521, %520 : vector<2x8x1xf32>
    %523 = arith.mulf %519, %522 : vector<2x8x1xf32>
    %cst_171 = arith.constant 0.000000e+00 : f32
    %524 = vector.broadcast %cst_171 : f32 to vector<2x8x1xf32>
    %525 = arith.cmpf oeq, %518, %524 : vector<2x8x1xf32>
    %cst_172 = arith.constant 0x7F800000 : f32
    %526 = vector.broadcast %cst_172 : f32 to vector<2x8x1xf32>
    %527 = arith.select %525, %526, %523 : vector<2x8x1xi1>, vector<2x8x1xf32>
    %528 = vector.broadcast %527 : vector<2x8x1xf32> to vector<2x8x128xf32>
    %529 = arith.mulf %8, %528 : vector<2x8x128xf32>
    %cst_173 = arith.constant dense<0.000000e+00> : vector<2x128xf32>
    %530 = vector.multi_reduction <add>, %529, %cst_173 [1] : vector<2x8x128xf32> to vector<2x128xf32>
    %531 = vector.shape_cast %530 : vector<2x128xf32> to vector<2x1x128xf32>
    %532 = tpu.reciprocal %531 {approx = true} : vector<2x1x128xf32> -> vector<2x1x128xf32>
    %533 = arith.mulf %531, %532 : vector<2x1x128xf32>
    %cst_174 = arith.constant 2.000000e+00 : f32
    %534 = vector.broadcast %cst_174 : f32 to vector<2x1x128xf32>
    %535 = arith.subf %534, %533 : vector<2x1x128xf32>
    %536 = arith.mulf %532, %535 : vector<2x1x128xf32>
    %cst_175 = arith.constant 0.000000e+00 : f32
    %537 = vector.broadcast %cst_175 : f32 to vector<2x1x128xf32>
    %538 = arith.cmpf oeq, %531, %537 : vector<2x1x128xf32>
    %cst_176 = arith.constant 0x7F800000 : f32
    %539 = vector.broadcast %cst_176 : f32 to vector<2x1x128xf32>
    %540 = arith.select %538, %539, %536 : vector<2x1x128xi1>, vector<2x1x128xf32>
    %cst_177 = arith.constant 1.000000e+00 : f32
    %541 = vector.broadcast %cst_177 : f32 to vector<2x1x128xf32>
    %542 = arith.minimumf %540, %541 : vector<2x1x128xf32>
    %c19_i32 = arith.constant 19 : i32
    %543 = vector.broadcast %542 : vector<2x1x128xf32> to vector<2x8x128xf32>
    %544 = arith.mulf %8, %543 : vector<2x8x128xf32>
    %cst_178 = arith.constant dense<0.000000e+00> : vector<2x8xf32>
    %545 = vector.multi_reduction <add>, %544, %cst_178 [2] : vector<2x8x128xf32> to vector<2x8xf32>
    %546 = vector.shape_cast %545 : vector<2x8xf32> to vector<2x8x1xf32>
    %547 = tpu.reciprocal %546 {approx = true} : vector<2x8x1xf32> -> vector<2x8x1xf32>
    %548 = arith.mulf %546, %547 : vector<2x8x1xf32>
    %cst_179 = arith.constant 2.000000e+00 : f32
    %549 = vector.broadcast %cst_179 : f32 to vector<2x8x1xf32>
    %550 = arith.subf %549, %548 : vector<2x8x1xf32>
    %551 = arith.mulf %547, %550 : vector<2x8x1xf32>
    %cst_180 = arith.constant 0.000000e+00 : f32
    %552 = vector.broadcast %cst_180 : f32 to vector<2x8x1xf32>
    %553 = arith.cmpf oeq, %546, %552 : vector<2x8x1xf32>
    %cst_181 = arith.constant 0x7F800000 : f32
    %554 = vector.broadcast %cst_181 : f32 to vector<2x8x1xf32>
    %555 = arith.select %553, %554, %551 : vector<2x8x1xi1>, vector<2x8x1xf32>
    %556 = vector.broadcast %555 : vector<2x8x1xf32> to vector<2x8x128xf32>
    %557 = arith.mulf %8, %556 : vector<2x8x128xf32>
    %cst_182 = arith.constant dense<0.000000e+00> : vector<2x128xf32>
    %558 = vector.multi_reduction <add>, %557, %cst_182 [1] : vector<2x8x128xf32> to vector<2x128xf32>
    %559 = vector.shape_cast %558 : vector<2x128xf32> to vector<2x1x128xf32>
    %560 = tpu.reciprocal %559 {approx = true} : vector<2x1x128xf32> -> vector<2x1x128xf32>
    %561 = arith.mulf %559, %560 : vector<2x1x128xf32>
    %cst_183 = arith.constant 2.000000e+00 : f32
    %562 = vector.broadcast %cst_183 : f32 to vector<2x1x128xf32>
    %563 = arith.subf %562, %561 : vector<2x1x128xf32>
    %564 = arith.mulf %560, %563 : vector<2x1x128xf32>
    %cst_184 = arith.constant 0.000000e+00 : f32
    %565 = vector.broadcast %cst_184 : f32 to vector<2x1x128xf32>
    %566 = arith.cmpf oeq, %559, %565 : vector<2x1x128xf32>
    %cst_185 = arith.constant 0x7F800000 : f32
    %567 = vector.broadcast %cst_185 : f32 to vector<2x1x128xf32>
    %568 = arith.select %566, %567, %564 : vector<2x1x128xi1>, vector<2x1x128xf32>
    %cst_186 = arith.constant 1.000000e+00 : f32
    %569 = vector.broadcast %cst_186 : f32 to vector<2x1x128xf32>
    %570 = arith.minimumf %568, %569 : vector<2x1x128xf32>
    %571 = vector.broadcast %555 : vector<2x8x1xf32> to vector<2x8x128xf32>
    %572 = arith.mulf %571, %8 : vector<2x8x128xf32>
    %573 = vector.broadcast %570 : vector<2x1x128xf32> to vector<2x8x128xf32>
    %574 = arith.mulf %572, %573 : vector<2x8x128xf32>
    %575 = arith.index_cast %3 : i32 to index
    %c0_187 = arith.constant 0 : index
    %c0_188 = arith.constant 0 : index
    %576 = vector.load %arg2[%575, %c0_187, %c0_188] : memref<2x8x128xf32, #tpu.memory_space<vmem>>, vector<2x8x128xf32>
    tpu.vector_store %arg2[%575, %c0_187, %c0_188], %574 {strides = array<i32>} : memref<2x8x128xf32, #tpu.memory_space<vmem>>, vector<2x8x128xf32>,
    %c1_i32_189 = arith.constant 1 : i32
    return
  }
  func.func @transform_0(%arg0: i32) -> (i32, i32, i32) {
    %c0_i32 = arith.constant 0 : i32
    %c0_i32_0 = arith.constant 0 : i32
    %c0_i32_1 = arith.constant 0 : i32
    return %arg0, %c0_i32, %c0_i32_0 : i32, i32, i32
  }
  func.func @transform_1(%arg0: i32) -> (i32, i32, i32) {
    %c0_i32 = arith.constant 0 : i32
    %c0_i32_0 = arith.constant 0 : i32
    %c0_i32_1 = arith.constant 0 : i32
    return %arg0, %c0_i32, %c0_i32_0 : i32, i32, i32
  }
}

</mosaic_0001>

<llo_original>
// kernel: tpu_custom_call.1
$region0: #{tpu_custom_call.1}
  #allocation0 [shape = 'u32[]', space=smem, size = 0x4, offset = 0x4, fixed_abs, tag = 'smem constant byte address 0x4 - core index']
  #allocation1 [shape = 'u32[144,128]{1,0:T(1,128)}', space=vmem, size = 0x12000, scoped, tag = 'internal scratch']
  %s0 = inlined_call_operand.hbm [shape: f32[2,8,128], index: 0, kind: input, shape index: {}]
  %s1 = inlined_call_operand.hbm [shape: f32[2,8,128], index: 1, kind: output, shape index: {}]
  %s2 = sld [smem:[#allocation0]]
  $region18: #{tpu_custom_call.1} parent=0
    _
  %s4 = ssub.s32 1, %s2
  %s5 = scalar_select 0, %s4, %s2
  $region1: #{tpu_custom_call.1} parent=0
    #allocation2 [shape = 'u8[8192]{0}', space=vmem, size = 0x2000, scoped, tag = 'input window, operand 0, single buffered']
    #allocation3 [shape = 's32[1]{0}', space=sflag, size = 0x4, scoped, tag = 'scoped memory for tpu_custom_call.1']
    #allocation4 [shape = 's32[1]{0}', space=sflag, size = 0x4, scoped, tag = 'scoped memory for tpu_custom_call.1']
    #allocation5 [shape = 'u8[8192]{0}', space=vmem, size = 0x2000, scoped, tag = 'output window, operand 0, single buffered']
    %6 = vsyncpa [#allocation3], 0
    %7 = vsyncpa [#allocation4], 0
    // Predicated region
    $region2: #{tpu_custom_call.1} parent=1 // pred_check
      _
    $region3: #{tpu_custom_call.1} parent=1 // pred_check_branch
      %9 = sbr.rel (0) target = $region5
    $region4: #{tpu_custom_call.1} parent=1 // pred_region
      %s11 = ssub.s32 256, 256
      %12 = vsyncadd [#allocation3], %s11
      %s13 = sshll.u32 [#allocation2], 4
      %s14 = int_to_ptr.vmem [resolvable:$true] %s13
      %19 = dma.hbm_to_vmem [thread:$0]  %s0, 256, %s14, [#allocation3], 128, 128, 8
    $region5: #{tpu_custom_call.1} parent=1 // pred_fallthru
      _
    // Predicated region
    $region6: #{tpu_custom_call.1} parent=1 // pred_check
      _
    $region7: #{tpu_custom_call.1} parent=1 // pred_check_branch
      %21 = sbr.rel (0) target = $region9
    $region8: #{tpu_custom_call.1} parent=1 // pred_region
      %22 = dma.done [#allocation3], 256
    $region9: #{tpu_custom_call.1} parent=1 // pred_fallthru
      _
    %s23 = smul.u32 0, 8
    %s24 = scalar_lea.vmem [#allocation2], %s23
    %v25 = vld [vmem:[%s24] sm:$0xff]
    %v26 = vld [vmem:[%s24 + $0x8] sm:$0xff]
    %v27 = vmul.f32 %v25, -10.0
    %v28 = vmul.f32 %v26, -10.0
    %v29 = vmul.f32 %v27, 1.442695
    %v30 = vpow.pop %v29
    %v31 = vmul.f32 %v28, 1.442695
    %v32 = vpow.pop %v31
    %33 = vadd.xlane.f32.xlu0 %v30
    %v34 = vpop.xlane.xlu0 %33
    %35 = vadd.xlane.f32.xlu0 %v32
    %v36 = vpop.xlane.xlu0 %35
    %v37 = vrcp.pop %v34
    %v38 = vrcp.pop %v36
    %v39 = vmul.f32 %v34, %v37
    %v40 = vmul.f32 %v36, %v38
    %v41 = vsub.f32 2.0, %v39
    %v42 = vsub.f32 2.0, %v40
    %v43 = vmul.f32 %v37, %v41
    %v44 = vmul.f32 %v38, %v42
    %vm45 = vcmp.eq.f32.partialorder %v34, 0.0
    %vm46 = vcmp.eq.f32.partialorder %v36, 0.0
    %v47 = vsel %vm45, inf, %v43
    %v48 = vsel %vm46, inf, %v44
    %v49 = vmul.f32 %v30, %v47
    %v50 = vmul.f32 %v32, %v48
    %v51 = vrot.slane %v49, 4
    %v52 = vadd.f32 %v49, %v51
    %v53 = vrot.slane %v52, 2
    %v54 = vadd.f32 %v52, %v53
    %v55 = vrot.slane %v54, 1
    %v56 = vadd.f32 %v54, %v55
    %v57 = vrot.slane %v50, 4
    %v58 = vadd.f32 %v50, %v57
    %v59 = vrot.slane %v58, 2
    %v60 = vadd.f32 %v58, %v59
    %v61 = vrot.slane %v60, 1
    %v62 = vadd.f32 %v60, %v61
    %v63 = vrcp.pop %v56
    %v64 = vrcp.pop %v62
    %v65 = vmul.f32 %v56, %v63
    %v66 = vmul.f32 %v62, %v64
    %v67 = vsub.f32 2.0, %v65
    %v68 = vsub.f32 2.0, %v66
    %v69 = vmul.f32 %v63, %v67
    %v70 = vmul.f32 %v64, %v68
    %vm71 = vcmp.eq.f32.partialorder %v56, 0.0
    %vm72 = vcmp.eq.f32.partialorder %v62, 0.0
    %v73 = vsel %vm71, inf, %v69
    %v74 = vsel %vm72, inf, %v70
    %v75 = vmin.f32 %v73, 1.0
    %v76 = vmin.f32 %v74, 1.0
    %v77 = vmul.f32 %v30, %v75
    %v78 = vmul.f32 %v32, %v76
    %79 = vadd.xlane.f32.xlu0 %v77
    %v80 = vpop.xlane.xlu0 %79
    %81 = vadd.xlane.f32.xlu0 %v78
    %v82 = vpop.xlane.xlu0 %81
    %v83 = vrcp.pop %v80
    %v84 = vrcp.pop %v82
    %v85 = vmul.f32 %v80, %v83
    %v86 = vmul.f32 %v82, %v84
    %v87 = vsub.f32 2.0, %v85
    %v88 = vsub.f32 2.0, %v86
    %v89 = vmul.f32 %v83, %v87
    %v90 = vmul.f32 %v84, %v88
    %vm91 = vcmp.eq.f32.partialorder %v80, 0.0
    %vm92 = vcmp.eq.f32.partialorder %v82, 0.0
    %v93 = vsel %vm91, inf, %v89
    %v94 = vsel %vm92, inf, %v90
    %v95 = vmul.f32 %v30, %v93
    %v96 = vmul.f32 %v32, %v94
    %v97 = vrot.slane %v95, 4
    %v98 = vadd.f32 %v95, %v97
    %v99 = vrot.slane %v98, 2
    %v100 = vadd.f32 %v98, %v99
    %v101 = vrot.slane %v100, 1
    %v102 = vadd.f32 %v100, %v101
    %v103 = vrot.slane %v96, 4
    %v104 = vadd.f32 %v96, %v103
    %v105 = vrot.slane %v104, 2
    %v106 = vadd.f32 %v104, %v105
    %v107 = vrot.slane %v106, 1
    %v108 = vadd.f32 %v106, %v107
    %v109 = vrcp.pop %v102
    %v110 = vrcp.pop %v108
    %v111 = vmul.f32 %v102, %v109
    %v112 = vmul.f32 %v108, %v110
    %v113 = vsub.f32 2.0, %v111
    %v114 = vsub.f32 2.0, %v112
    %v115 = vmul.f32 %v109, %v113
    %v116 = vmul.f32 %v110, %v114
    %vm117 = vcmp.eq.f32.partialorder %v102, 0.0
    %vm118 = vcmp.eq.f32.partialorder %v108, 0.0
    %v119 = vsel %vm117, inf, %v115
    %v120 = vsel %vm118, inf, %v116
    %v121 = vmin.f32 %v119, 1.0
    %v122 = vmin.f32 %v120, 1.0
    %v123 = vmul.f32 %v30, %v121
    %v124 = vmul.f32 %v32, %v122
    %125 = vadd.xlane.f32.xlu0 %v123
    %v126 = vpop.xlane.xlu0 %125
    %127 = vadd.xlane.f32.xlu0 %v124
    %v128 = vpop.xlane.xlu0 %127
    %v129 = vrcp.pop %v126
    %v130 = vrcp.pop %v128
    %v131 = vmul.f32 %v126, %v129
    %v132 = vmul.f32 %v128, %v130
    %v133 = vsub.f32 2.0, %v131
    %v134 = vsub.f32 2.0, %v132
    %v135 = vmul.f32 %v129, %v133
    %v136 = vmul.f32 %v130, %v134
    %vm137 = vcmp.eq.f32.partialorder %v126, 0.0
    %vm138 = vcmp.eq.f32.partialorder %v128, 0.0
    %v139 = vsel %vm137, inf, %v135
    %v140 = vsel %vm138, inf, %v136
    %v141 = vmul.f32 %v30, %v139
    %v142 = vmul.f32 %v32, %v140
    %v143 = vrot.slane %v141, 4
    %v144 = vadd.f32 %v141, %v143
    %v145 = vrot.slane %v144, 2
    %v146 = vadd.f32 %v144, %v145
    %v147 = vrot.slane %v146, 1
    %v148 = vadd.f32 %v146, %v147
    %v149 = vrot.slane %v142, 4
    %v150 = vadd.f32 %v142, %v149
    %v151 = vrot.slane %v150, 2
    %v152 = vadd.f32 %v150, %v151
    %v153 = vrot.slane %v152, 1
    %v154 = vadd.f32 %v152, %v153
    %v155 = vrcp.pop %v148
    %v156 = vrcp.pop %v154
    %v157 = vmul.f32 %v148, %v155
    %v158 = vmul.f32 %v154, %v156
    %v159 = vsub.f32 2.0, %v157
    %v160 = vsub.f32 2.0, %v158
    %v161 = vmul.f32 %v155, %v159
    %v162 = vmul.f32 %v156, %v160
    %vm163 = vcmp.eq.f32.partialorder %v148, 0.0
    %vm164 = vcmp.eq.f32.partialorder %v154, 0.0
    %v165 = vsel %vm163, inf, %v161
    %v166 = vsel %vm164, inf, %v162
    %v167 = vmin.f32 %v165, 1.0
    %v168 = vmin.f32 %v166, 1.0
    %v169 = vmul.f32 %v30, %v167
    %v170 = vmul.f32 %v32, %v168
    %171 = vadd.xlane.f32.xlu0 %v169
    %v172 = vpop.xlane.xlu0 %171
    %173 = vadd.xlane.f32.xlu0 %v170
    %v174 = vpop.xlane.xlu0 %173
    %v175 = vrcp.pop %v172
    %v176 = vrcp.pop %v174
    %v177 = vmul.f32 %v172, %v175
    %v178 = vmul.f32 %v174, %v176
    %v179 = vsub.f32 2.0, %v177
    %v180 = vsub.f32 2.0, %v178
    %v181 = vmul.f32 %v175, %v179
    %v182 = vmul.f32 %v176, %v180
    %vm183 = vcmp.eq.f32.partialorder %v172, 0.0
    %vm184 = vcmp.eq.f32.partialorder %v174, 0.0
    %v185 = vsel %vm183, inf, %v181
    %v186 = vsel %vm184, inf, %v182
    %v187 = vmul.f32 %v30, %v185
    %v188 = vmul.f32 %v32, %v186
    %v189 = vrot.slane %v187, 4
    %v190 = vadd.f32 %v187, %v189
    %v191 = vrot.slane %v190, 2
    %v192 = vadd.f32 %v190, %v191
    %v193 = vrot.slane %v192, 1
    %v194 = vadd.f32 %v192, %v193
    %v195 = vrot.slane %v188, 4
    %v196 = vadd.f32 %v188, %v195
    %v197 = vrot.slane %v196, 2
    %v198 = vadd.f32 %v196, %v197
    %v199 = vrot.slane %v198, 1
    %v200 = vadd.f32 %v198, %v199
    %v201 = vrcp.pop %v194
    %v202 = vrcp.pop %v200
    %v203 = vmul.f32 %v194, %v201
    %v204 = vmul.f32 %v200, %v202
    %v205 = vsub.f32 2.0, %v203
    %v206 = vsub.f32 2.0, %v204
    %v207 = vmul.f32 %v201, %v205
    %v208 = vmul.f32 %v202, %v206
    %vm209 = vcmp.eq.f32.partialorder %v194, 0.0
    %vm210 = vcmp.eq.f32.partialorder %v200, 0.0
    %v211 = vsel %vm209, inf, %v207
    %v212 = vsel %vm210, inf, %v208
    %v213 = vmin.f32 %v211, 1.0
    %v214 = vmin.f32 %v212, 1.0
    %v215 = vmul.f32 %v30, %v213
    %v216 = vmul.f32 %v32, %v214
    %217 = vadd.xlane.f32.xlu0 %v215
    %v218 = vpop.xlane.xlu0 %217
    %219 = vadd.xlane.f32.xlu0 %v216
    %v220 = vpop.xlane.xlu0 %219
    %v221 = vrcp.pop %v218
    %v222 = vrcp.pop %v220
    %v223 = vmul.f32 %v218, %v221
    %v224 = vmul.f32 %v220, %v222
    %v225 = vsub.f32 2.0, %v223
    %v226 = vsub.f32 2.0, %v224
    %v227 = vmul.f32 %v221, %v225
    %v228 = vmul.f32 %v222, %v226
    %vm229 = vcmp.eq.f32.partialorder %v218, 0.0
    %vm230 = vcmp.eq.f32.partialorder %v220, 0.0
    %v231 = vsel %vm229, inf, %v227
    %v232 = vsel %vm230, inf, %v228
    %v233 = vmul.f32 %v30, %v231
    %v234 = vmul.f32 %v32, %v232
    %v235 = vrot.slane %v233, 4
    %v236 = vadd.f32 %v233, %v235
    %v237 = vrot.slane %v236, 2
    %v238 = vadd.f32 %v236, %v237
    %v239 = vrot.slane %v238, 1
    %v240 = vadd.f32 %v238, %v239
    %v241 = vrot.slane %v234, 4
    %v242 = vadd.f32 %v234, %v241
    %v243 = vrot.slane %v242, 2
    %v244 = vadd.f32 %v242, %v243
    %v245 = vrot.slane %v244, 1
    %v246 = vadd.f32 %v244, %v245
    %v247 = vrcp.pop %v240
    %v248 = vrcp.pop %v246
    %v249 = vmul.f32 %v240, %v247
    %v250 = vmul.f32 %v246, %v248
    %v251 = vsub.f32 2.0, %v249
    %v252 = vsub.f32 2.0, %v250
    %v253 = vmul.f32 %v247, %v251
    %v254 = vmul.f32 %v248, %v252
    %vm255 = vcmp.eq.f32.partialorder %v240, 0.0
    %vm256 = vcmp.eq.f32.partialorder %v246, 0.0
    %v257 = vsel %vm255, inf, %v253
    %v258 = vsel %vm256, inf, %v254
    %v259 = vmin.f32 %v257, 1.0
    %v260 = vmin.f32 %v258, 1.0
    %v261 = vmul.f32 %v30, %v259
    %v262 = vmul.f32 %v32, %v260
    %263 = vadd.xlane.f32.xlu0 %v261
    %v264 = vpop.xlane.xlu0 %263
    %265 = vadd.xlane.f32.xlu0 %v262
    %v266 = vpop.xlane.xlu0 %265
    %v267 = vrcp.pop %v264
    %v268 = vrcp.pop %v266
    %v269 = vmul.f32 %v264, %v267
    %v270 = vmul.f32 %v266, %v268
    %v271 = vsub.f32 2.0, %v269
    %v272 = vsub.f32 2.0, %v270
    %v273 = vmul.f32 %v267, %v271
    %v274 = vmul.f32 %v268, %v272
    %vm275 = vcmp.eq.f32.partialorder %v264, 0.0
    %vm276 = vcmp.eq.f32.partialorder %v266, 0.0
    %v277 = vsel %vm275, inf, %v273
    %v278 = vsel %vm276, inf, %v274
    %v279 = vmul.f32 %v30, %v277
    %v280 = vmul.f32 %v32, %v278
    %v281 = vrot.slane %v279, 4
    %v282 = vadd.f32 %v279, %v281
    %v283 = vrot.slane %v282, 2
    %v284 = vadd.f32 %v282, %v283
    %v285 = vrot.slane %v284, 1
    %v286 = vadd.f32 %v284, %v285
    %v287 = vrot.slane %v280, 4
    %v288 = vadd.f32 %v280, %v287
    %v289 = vrot.slane %v288, 2
    %v290 = vadd.f32 %v288, %v289
    %v291 = vrot.slane %v290, 1
    %v292 = vadd.f32 %v290, %v291
    %v293 = vrcp.pop %v286
    %v294 = vrcp.pop %v292
    %v295 = vmul.f32 %v286, %v293
    %v296 = vmul.f32 %v292, %v294
    %v297 = vsub.f32 2.0, %v295
    %v298 = vsub.f32 2.0, %v296
    %v299 = vmul.f32 %v293, %v297
    %v300 = vmul.f32 %v294, %v298
    %vm301 = vcmp.eq.f32.partialorder %v286, 0.0
    %vm302 = vcmp.eq.f32.partialorder %v292, 0.0
    %v303 = vsel %vm301, inf, %v299
    %v304 = vsel %vm302, inf, %v300
    %v305 = vmin.f32 %v303, 1.0
    %v306 = vmin.f32 %v304, 1.0
    %v307 = vmul.f32 %v30, %v305
    %v308 = vmul.f32 %v32, %v306
    %309 = vadd.xlane.f32.xlu0 %v307
    %v310 = vpop.xlane.xlu0 %309
    %311 = vadd.xlane.f32.xlu0 %v308
    %v312 = vpop.xlane.xlu0 %311
    %v313 = vrcp.pop %v310
    %v314 = vrcp.pop %v312
    %v315 = vmul.f32 %v310, %v313
    %v316 = vmul.f32 %v312, %v314
    %v317 = vsub.f32 2.0, %v315
    %v318 = vsub.f32 2.0, %v316
    %v319 = vmul.f32 %v313, %v317
    %v320 = vmul.f32 %v314, %v318
    %vm321 = vcmp.eq.f32.partialorder %v310, 0.0
    %vm322 = vcmp.eq.f32.partialorder %v312, 0.0
    %v323 = vsel %vm321, inf, %v319
    %v324 = vsel %vm322, inf, %v320
    %v325 = vmul.f32 %v30, %v323
    %v326 = vmul.f32 %v32, %v324
    %v327 = vrot.slane %v325, 4
    %v328 = vadd.f32 %v325, %v327
    %v329 = vrot.slane %v328, 2
    %v330 = vadd.f32 %v328, %v329
    %v331 = vrot.slane %v330, 1
    %v332 = vadd.f32 %v330, %v331
    %v333 = vrot.slane %v326, 4
    %v334 = vadd.f32 %v326, %v333
    %v335 = vrot.slane %v334, 2
    %v336 = vadd.f32 %v334, %v335
    %v337 = vrot.slane %v336, 1
    %v338 = vadd.f32 %v336, %v337
    %v339 = vrcp.pop %v332
    %v340 = vrcp.pop %v338
    %v341 = vmul.f32 %v332, %v339
    %v342 = vmul.f32 %v338, %v340
    %v343 = vsub.f32 2.0, %v341
    %v344 = vsub.f32 2.0, %v342
    %v345 = vmul.f32 %v339, %v343
    %v346 = vmul.f32 %v340, %v344
    %vm347 = vcmp.eq.f32.partialorder %v332, 0.0
    %vm348 = vcmp.eq.f32.partialorder %v338, 0.0
    %v349 = vsel %vm347, inf, %v345
    %v350 = vsel %vm348, inf, %v346
    %v351 = vmin.f32 %v349, 1.0
    %v352 = vmin.f32 %v350, 1.0
    %v353 = vmul.f32 %v30, %v351
    %v354 = vmul.f32 %v32, %v352
    %355 = vadd.xlane.f32.xlu0 %v353
    %v356 = vpop.xlane.xlu0 %355
    %357 = vadd.xlane.f32.xlu0 %v354
    %v358 = vpop.xlane.xlu0 %357
    %v359 = vrcp.pop %v356
    %v360 = vrcp.pop %v358
    %v361 = vmul.f32 %v356, %v359
    %v362 = vmul.f32 %v358, %v360
    %v363 = vsub.f32 2.0, %v361
    %v364 = vsub.f32 2.0, %v362
    %v365 = vmul.f32 %v359, %v363
    %v366 = vmul.f32 %v360, %v364
    %vm367 = vcmp.eq.f32.partialorder %v356, 0.0
    %vm368 = vcmp.eq.f32.partialorder %v358, 0.0
    %v369 = vsel %vm367, inf, %v365
    %v370 = vsel %vm368, inf, %v366
    %v371 = vmul.f32 %v30, %v369
    %v372 = vmul.f32 %v32, %v370
    %v373 = vrot.slane %v371, 4
    %v374 = vadd.f32 %v371, %v373
    %v375 = vrot.slane %v374, 2
    %v376 = vadd.f32 %v374, %v375
    %v377 = vrot.slane %v376, 1
    %v378 = vadd.f32 %v376, %v377
    %v379 = vrot.slane %v372, 4
    %v380 = vadd.f32 %v372, %v379
    %v381 = vrot.slane %v380, 2
    %v382 = vadd.f32 %v380, %v381
    %v383 = vrot.slane %v382, 1
    %v384 = vadd.f32 %v382, %v383
    %v385 = vrcp.pop %v378
    %v386 = vrcp.pop %v384
    %v387 = vmul.f32 %v378, %v385
    %v388 = vmul.f32 %v384, %v386
    %v389 = vsub.f32 2.0, %v387
    %v390 = vsub.f32 2.0, %v388
    %v391 = vmul.f32 %v385, %v389
    %v392 = vmul.f32 %v386, %v390
    %vm393 = vcmp.eq.f32.partialorder %v378, 0.0
    %vm394 = vcmp.eq.f32.partialorder %v384, 0.0
    %v395 = vsel %vm393, inf, %v391
    %v396 = vsel %vm394, inf, %v392
    %v397 = vmin.f32 %v395, 1.0
    %v398 = vmin.f32 %v396, 1.0
    %v399 = vmul.f32 %v30, %v397
    %v400 = vmul.f32 %v32, %v398
    %401 = vadd.xlane.f32.xlu0 %v399
    %v402 = vpop.xlane.xlu0 %401
    %403 = vadd.xlane.f32.xlu0 %v400
    %v404 = vpop.xlane.xlu0 %403
    %v405 = vrcp.pop %v402
    %v406 = vrcp.pop %v404
    %v407 = vmul.f32 %v402, %v405
    %v408 = vmul.f32 %v404, %v406
    %v409 = vsub.f32 2.0, %v407
    %v410 = vsub.f32 2.0, %v408
    %v411 = vmul.f32 %v405, %v409
    %v412 = vmul.f32 %v406, %v410
    %vm413 = vcmp.eq.f32.partialorder %v402, 0.0
    %vm414 = vcmp.eq.f32.partialorder %v404, 0.0
    %v415 = vsel %vm413, inf, %v411
    %v416 = vsel %vm414, inf, %v412
    %v417 = vmul.f32 %v30, %v415
    %v418 = vmul.f32 %v32, %v416
    %v419 = vrot.slane %v417, 4
    %v420 = vadd.f32 %v417, %v419
    %v421 = vrot.slane %v420, 2
    %v422 = vadd.f32 %v420, %v421
    %v423 = vrot.slane %v422, 1
    %v424 = vadd.f32 %v422, %v423
    %v425 = vrot.slane %v418, 4
    %v426 = vadd.f32 %v418, %v425
    %v427 = vrot.slane %v426, 2
    %v428 = vadd.f32 %v426, %v427
    %v429 = vrot.slane %v428, 1
    %v430 = vadd.f32 %v428, %v429
    %v431 = vrcp.pop %v424
    %v432 = vrcp.pop %v430
    %v433 = vmul.f32 %v424, %v431
    %v434 = vmul.f32 %v430, %v432
    %v435 = vsub.f32 2.0, %v433
    %v436 = vsub.f32 2.0, %v434
    %v437 = vmul.f32 %v431, %v435
    %v438 = vmul.f32 %v432, %v436
    %vm439 = vcmp.eq.f32.partialorder %v424, 0.0
    %vm440 = vcmp.eq.f32.partialorder %v430, 0.0
    %v441 = vsel %vm439, inf, %v437
    %v442 = vsel %vm440, inf, %v438
    %v443 = vmin.f32 %v441, 1.0
    %v444 = vmin.f32 %v442, 1.0
    %v445 = vmul.f32 %v30, %v443
    %v446 = vmul.f32 %v32, %v444
    %447 = vadd.xlane.f32.xlu0 %v445
    %v448 = vpop.xlane.xlu0 %447
    %449 = vadd.xlane.f32.xlu0 %v446
    %v450 = vpop.xlane.xlu0 %449
    %v451 = vrcp.pop %v448
    %v452 = vrcp.pop %v450
    %v453 = vmul.f32 %v448, %v451
    %v454 = vmul.f32 %v450, %v452
    %v455 = vsub.f32 2.0, %v453
    %v456 = vsub.f32 2.0, %v454
    %v457 = vmul.f32 %v451, %v455
    %v458 = vmul.f32 %v452, %v456
    %vm459 = vcmp.eq.f32.partialorder %v448, 0.0
    %vm460 = vcmp.eq.f32.partialorder %v450, 0.0
    %v461 = vsel %vm459, inf, %v457
    %v462 = vsel %vm460, inf, %v458
    %v463 = vmul.f32 %v30, %v461
    %v464 = vmul.f32 %v32, %v462
    %v465 = vrot.slane %v463, 4
    %v466 = vadd.f32 %v463, %v465
    %v467 = vrot.slane %v466, 2
    %v468 = vadd.f32 %v466, %v467
    %v469 = vrot.slane %v468, 1
    %v470 = vadd.f32 %v468, %v469
    %v471 = vrot.slane %v464, 4
    %v472 = vadd.f32 %v464, %v471
    %v473 = vrot.slane %v472, 2
    %v474 = vadd.f32 %v472, %v473
    %v475 = vrot.slane %v474, 1
    %v476 = vadd.f32 %v474, %v475
    %v477 = vrcp.pop %v470
    %v478 = vrcp.pop %v476
    %v479 = vmul.f32 %v470, %v477
    %v480 = vmul.f32 %v476, %v478
    %v481 = vsub.f32 2.0, %v479
    %v482 = vsub.f32 2.0, %v480
    %v483 = vmul.f32 %v477, %v481
    %v484 = vmul.f32 %v478, %v482
    %vm485 = vcmp.eq.f32.partialorder %v470, 0.0
    %vm486 = vcmp.eq.f32.partialorder %v476, 0.0
    %v487 = vsel %vm485, inf, %v483
    %v488 = vsel %vm486, inf, %v484
    %v489 = vmin.f32 %v487, 1.0
    %v490 = vmin.f32 %v488, 1.0
    %v491 = vmul.f32 %v30, %v489
    %v492 = vmul.f32 %v32, %v490
    %493 = vadd.xlane.f32.xlu0 %v491
    %v494 = vpop.xlane.xlu0 %493
    %495 = vadd.xlane.f32.xlu0 %v492
    %v496 = vpop.xlane.xlu0 %495
    %v497 = vrcp.pop %v494
    %v498 = vrcp.pop %v496
    %v499 = vmul.f32 %v494, %v497
    %v500 = vmul.f32 %v496, %v498
    %v501 = vsub.f32 2.0, %v499
    %v502 = vsub.f32 2.0, %v500
    %v503 = vmul.f32 %v497, %v501
    %v504 = vmul.f32 %v498, %v502
    %vm505 = vcmp.eq.f32.partialorder %v494, 0.0
    %vm506 = vcmp.eq.f32.partialorder %v496, 0.0
    %v507 = vsel %vm505, inf, %v503
    %v508 = vsel %vm506, inf, %v504
    %v509 = vmul.f32 %v30, %v507
    %v510 = vmul.f32 %v32, %v508
    %v511 = vrot.slane %v509, 4
    %v512 = vadd.f32 %v509, %v511
    %v513 = vrot.slane %v512, 2
    %v514 = vadd.f32 %v512, %v513
    %v515 = vrot.slane %v514, 1
    %v516 = vadd.f32 %v514, %v515
    %v517 = vrot.slane %v510, 4
    %v518 = vadd.f32 %v510, %v517
    %v519 = vrot.slane %v518, 2
    %v520 = vadd.f32 %v518, %v519
    %v521 = vrot.slane %v520, 1
    %v522 = vadd.f32 %v520, %v521
    %v523 = vrcp.pop %v516
    %v524 = vrcp.pop %v522
    %v525 = vmul.f32 %v516, %v523
    %v526 = vmul.f32 %v522, %v524
    %v527 = vsub.f32 2.0, %v525
    %v528 = vsub.f32 2.0, %v526
    %v529 = vmul.f32 %v523, %v527
    %v530 = vmul.f32 %v524, %v528
    %vm531 = vcmp.eq.f32.partialorder %v516, 0.0
    %vm532 = vcmp.eq.f32.partialorder %v522, 0.0
    %v533 = vsel %vm531, inf, %v529
    %v534 = vsel %vm532, inf, %v530
    %v535 = vmin.f32 %v533, 1.0
    %v536 = vmin.f32 %v534, 1.0
    %v537 = vmul.f32 %v30, %v535
    %v538 = vmul.f32 %v32, %v536
    %539 = vadd.xlane.f32.xlu0 %v537
    %v540 = vpop.xlane.xlu0 %539
    %541 = vadd.xlane.f32.xlu0 %v538
    %v542 = vpop.xlane.xlu0 %541
    %v543 = vrcp.pop %v540
    %v544 = vrcp.pop %v542
    %v545 = vmul.f32 %v540, %v543
    %v546 = vmul.f32 %v542, %v544
    %v547 = vsub.f32 2.0, %v545
    %v548 = vsub.f32 2.0, %v546
    %v549 = vmul.f32 %v543, %v547
    %v550 = vmul.f32 %v544, %v548
    %vm551 = vcmp.eq.f32.partialorder %v540, 0.0
    %vm552 = vcmp.eq.f32.partialorder %v542, 0.0
    %v553 = vsel %vm551, inf, %v549
    %v554 = vsel %vm552, inf, %v550
    %v555 = vmul.f32 %v30, %v553
    %v556 = vmul.f32 %v32, %v554
    %v557 = vrot.slane %v555, 4
    %v558 = vadd.f32 %v555, %v557
    %v559 = vrot.slane %v558, 2
    %v560 = vadd.f32 %v558, %v559
    %v561 = vrot.slane %v560, 1
    %v562 = vadd.f32 %v560, %v561
    %v563 = vrot.slane %v556, 4
    %v564 = vadd.f32 %v556, %v563
    %v565 = vrot.slane %v564, 2
    %v566 = vadd.f32 %v564, %v565
    %v567 = vrot.slane %v566, 1
    %v568 = vadd.f32 %v566, %v567
    %v569 = vrcp.pop %v562
    %v570 = vrcp.pop %v568
    %v571 = vmul.f32 %v562, %v569
    %v572 = vmul.f32 %v568, %v570
    %v573 = vsub.f32 2.0, %v571
    %v574 = vsub.f32 2.0, %v572
    %v575 = vmul.f32 %v569, %v573
    %v576 = vmul.f32 %v570, %v574
    %vm577 = vcmp.eq.f32.partialorder %v562, 0.0
    %vm578 = vcmp.eq.f32.partialorder %v568, 0.0
    %v579 = vsel %vm577, inf, %v575
    %v580 = vsel %vm578, inf, %v576
    %v581 = vmin.f32 %v579, 1.0
    %v582 = vmin.f32 %v580, 1.0
    %v583 = vmul.f32 %v30, %v581
    %v584 = vmul.f32 %v32, %v582
    %585 = vadd.xlane.f32.xlu0 %v583
    %v586 = vpop.xlane.xlu0 %585
    %587 = vadd.xlane.f32.xlu0 %v584
    %v588 = vpop.xlane.xlu0 %587
    %v589 = vrcp.pop %v586
    %v590 = vrcp.pop %v588
    %v591 = vmul.f32 %v586, %v589
    %v592 = vmul.f32 %v588, %v590
    %v593 = vsub.f32 2.0, %v591
    %v594 = vsub.f32 2.0, %v592
    %v595 = vmul.f32 %v589, %v593
    %v596 = vmul.f32 %v590, %v594
    %vm597 = vcmp.eq.f32.partialorder %v586, 0.0
    %vm598 = vcmp.eq.f32.partialorder %v588, 0.0
    %v599 = vsel %vm597, inf, %v595
    %v600 = vsel %vm598, inf, %v596
    %v601 = vmul.f32 %v30, %v599
    %v602 = vmul.f32 %v32, %v600
    %v603 = vrot.slane %v601, 4
    %v604 = vadd.f32 %v601, %v603
    %v605 = vrot.slane %v604, 2
    %v606 = vadd.f32 %v604, %v605
    %v607 = vrot.slane %v606, 1
    %v608 = vadd.f32 %v606, %v607
    %v609 = vrot.slane %v602, 4
    %v610 = vadd.f32 %v602, %v609
    %v611 = vrot.slane %v610, 2
    %v612 = vadd.f32 %v610, %v611
    %v613 = vrot.slane %v612, 1
    %v614 = vadd.f32 %v612, %v613
    %v615 = vrcp.pop %v608
    %v616 = vrcp.pop %v614
    %v617 = vmul.f32 %v608, %v615
    %v618 = vmul.f32 %v614, %v616
    %v619 = vsub.f32 2.0, %v617
    %v620 = vsub.f32 2.0, %v618
    %v621 = vmul.f32 %v615, %v619
    %v622 = vmul.f32 %v616, %v620
    %vm623 = vcmp.eq.f32.partialorder %v608, 0.0
    %vm624 = vcmp.eq.f32.partialorder %v614, 0.0
    %v625 = vsel %vm623, inf, %v621
    %v626 = vsel %vm624, inf, %v622
    %v627 = vmin.f32 %v625, 1.0
    %v628 = vmin.f32 %v626, 1.0
    %v629 = vmul.f32 %v30, %v627
    %v630 = vmul.f32 %v32, %v628
    %631 = vadd.xlane.f32.xlu0 %v629
    %v632 = vpop.xlane.xlu0 %631
    %633 = vadd.xlane.f32.xlu0 %v630
    %v634 = vpop.xlane.xlu0 %633
    %v635 = vrcp.pop %v632
    %v636 = vrcp.pop %v634
    %v637 = vmul.f32 %v632, %v635
    %v638 = vmul.f32 %v634, %v636
    %v639 = vsub.f32 2.0, %v637
    %v640 = vsub.f32 2.0, %v638
    %v641 = vmul.f32 %v635, %v639
    %v642 = vmul.f32 %v636, %v640
    %vm643 = vcmp.eq.f32.partialorder %v632, 0.0
    %vm644 = vcmp.eq.f32.partialorder %v634, 0.0
    %v645 = vsel %vm643, inf, %v641
    %v646 = vsel %vm644, inf, %v642
    %v647 = vmul.f32 %v30, %v645
    %v648 = vmul.f32 %v32, %v646
    %v649 = vrot.slane %v647, 4
    %v650 = vadd.f32 %v647, %v649
    %v651 = vrot.slane %v650, 2
    %v652 = vadd.f32 %v650, %v651
    %v653 = vrot.slane %v652, 1
    %v654 = vadd.f32 %v652, %v653
    %v655 = vrot.slane %v648, 4
    %v656 = vadd.f32 %v648, %v655
    %v657 = vrot.slane %v656, 2
    %v658 = vadd.f32 %v656, %v657
    %v659 = vrot.slane %v658, 1
    %v660 = vadd.f32 %v658, %v659
    %v661 = vrcp.pop %v654
    %v662 = vrcp.pop %v660
    %v663 = vmul.f32 %v654, %v661
    %v664 = vmul.f32 %v660, %v662
    %v665 = vsub.f32 2.0, %v663
    %v666 = vsub.f32 2.0, %v664
    %v667 = vmul.f32 %v661, %v665
    %v668 = vmul.f32 %v662, %v666
    %vm669 = vcmp.eq.f32.partialorder %v654, 0.0
    %vm670 = vcmp.eq.f32.partialorder %v660, 0.0
    %v671 = vsel %vm669, inf, %v667
    %v672 = vsel %vm670, inf, %v668
    %v673 = vmin.f32 %v671, 1.0
    %v674 = vmin.f32 %v672, 1.0
    %v675 = vmul.f32 %v30, %v673
    %v676 = vmul.f32 %v32, %v674
    %677 = vadd.xlane.f32.xlu0 %v675
    %v678 = vpop.xlane.xlu0 %677
    %679 = vadd.xlane.f32.xlu0 %v676
    %v680 = vpop.xlane.xlu0 %679
    %v681 = vrcp.pop %v678
    %v682 = vrcp.pop %v680
    %v683 = vmul.f32 %v678, %v681
    %v684 = vmul.f32 %v680, %v682
    %v685 = vsub.f32 2.0, %v683
    %v686 = vsub.f32 2.0, %v684
    %v687 = vmul.f32 %v681, %v685
    %v688 = vmul.f32 %v682, %v686
    %vm689 = vcmp.eq.f32.partialorder %v678, 0.0
    %vm690 = vcmp.eq.f32.partialorder %v680, 0.0
    %v691 = vsel %vm689, inf, %v687
    %v692 = vsel %vm690, inf, %v688
    %v693 = vmul.f32 %v30, %v691
    %v694 = vmul.f32 %v32, %v692
    %v695 = vrot.slane %v693, 4
    %v696 = vadd.f32 %v693, %v695
    %v697 = vrot.slane %v696, 2
    %v698 = vadd.f32 %v696, %v697
    %v699 = vrot.slane %v698, 1
    %v700 = vadd.f32 %v698, %v699
    %v701 = vrot.slane %v694, 4
    %v702 = vadd.f32 %v694, %v701
    %v703 = vrot.slane %v702, 2
    %v704 = vadd.f32 %v702, %v703
    %v705 = vrot.slane %v704, 1
    %v706 = vadd.f32 %v704, %v705
    %v707 = vrcp.pop %v700
    %v708 = vrcp.pop %v706
    %v709 = vmul.f32 %v700, %v707
    %v710 = vmul.f32 %v706, %v708
    %v711 = vsub.f32 2.0, %v709
    %v712 = vsub.f32 2.0, %v710
    %v713 = vmul.f32 %v707, %v711
    %v714 = vmul.f32 %v708, %v712
    %vm715 = vcmp.eq.f32.partialorder %v700, 0.0
    %vm716 = vcmp.eq.f32.partialorder %v706, 0.0
    %v717 = vsel %vm715, inf, %v713
    %v718 = vsel %vm716, inf, %v714
    %v719 = vmin.f32 %v717, 1.0
    %v720 = vmin.f32 %v718, 1.0
    %v721 = vmul.f32 %v30, %v719
    %v722 = vmul.f32 %v32, %v720
    %723 = vadd.xlane.f32.xlu0 %v721
    %v724 = vpop.xlane.xlu0 %723
    %725 = vadd.xlane.f32.xlu0 %v722
    %v726 = vpop.xlane.xlu0 %725
    %v727 = vrcp.pop %v724
    %v728 = vrcp.pop %v726
    %v729 = vmul.f32 %v724, %v727
    %v730 = vmul.f32 %v726, %v728
    %v731 = vsub.f32 2.0, %v729
    %v732 = vsub.f32 2.0, %v730
    %v733 = vmul.f32 %v727, %v731
    %v734 = vmul.f32 %v728, %v732
    %vm735 = vcmp.eq.f32.partialorder %v724, 0.0
    %vm736 = vcmp.eq.f32.partialorder %v726, 0.0
    %v737 = vsel %vm735, inf, %v733
    %v738 = vsel %vm736, inf, %v734
    %v739 = vmul.f32 %v30, %v737
    %v740 = vmul.f32 %v32, %v738
    %v741 = vrot.slane %v739, 4
    %v742 = vadd.f32 %v739, %v741
    %v743 = vrot.slane %v742, 2
    %v744 = vadd.f32 %v742, %v743
    %v745 = vrot.slane %v744, 1
    %v746 = vadd.f32 %v744, %v745
    %v747 = vrot.slane %v740, 4
    %v748 = vadd.f32 %v740, %v747
    %v749 = vrot.slane %v748, 2
    %v750 = vadd.f32 %v748, %v749
    %v751 = vrot.slane %v750, 1
    %v752 = vadd.f32 %v750, %v751
    %v753 = vrcp.pop %v746
    %v754 = vrcp.pop %v752
    %v755 = vmul.f32 %v746, %v753
    %v756 = vmul.f32 %v752, %v754
    %v757 = vsub.f32 2.0, %v755
    %v758 = vsub.f32 2.0, %v756
    %v759 = vmul.f32 %v753, %v757
    %v760 = vmul.f32 %v754, %v758
    %vm761 = vcmp.eq.f32.partialorder %v746, 0.0
    %vm762 = vcmp.eq.f32.partialorder %v752, 0.0
    %v763 = vsel %vm761, inf, %v759
    %v764 = vsel %vm762, inf, %v760
    %v765 = vmin.f32 %v763, 1.0
    %v766 = vmin.f32 %v764, 1.0
    %v767 = vmul.f32 %v30, %v765
    %v768 = vmul.f32 %v32, %v766
    %769 = vadd.xlane.f32.xlu0 %v767
    %v770 = vpop.xlane.xlu0 %769
    %771 = vadd.xlane.f32.xlu0 %v768
    %v772 = vpop.xlane.xlu0 %771
    %v773 = vrcp.pop %v770
    %v774 = vrcp.pop %v772
    %v775 = vmul.f32 %v770, %v773
    %v776 = vmul.f32 %v772, %v774
    %v777 = vsub.f32 2.0, %v775
    %v778 = vsub.f32 2.0, %v776
    %v779 = vmul.f32 %v773, %v777
    %v780 = vmul.f32 %v774, %v778
    %vm781 = vcmp.eq.f32.partialorder %v770, 0.0
    %vm782 = vcmp.eq.f32.partialorder %v772, 0.0
    %v783 = vsel %vm781, inf, %v779
    %v784 = vsel %vm782, inf, %v780
    %v785 = vmul.f32 %v30, %v783
    %v786 = vmul.f32 %v32, %v784
    %v787 = vrot.slane %v785, 4
    %v788 = vadd.f32 %v785, %v787
    %v789 = vrot.slane %v788, 2
    %v790 = vadd.f32 %v788, %v789
    %v791 = vrot.slane %v790, 1
    %v792 = vadd.f32 %v790, %v791
    %v793 = vrot.slane %v786, 4
    %v794 = vadd.f32 %v786, %v793
    %v795 = vrot.slane %v794, 2
    %v796 = vadd.f32 %v794, %v795
    %v797 = vrot.slane %v796, 1
    %v798 = vadd.f32 %v796, %v797
    %v799 = vrcp.pop %v792
    %v800 = vrcp.pop %v798
    %v801 = vmul.f32 %v792, %v799
    %v802 = vmul.f32 %v798, %v800
    %v803 = vsub.f32 2.0, %v801
    %v804 = vsub.f32 2.0, %v802
    %v805 = vmul.f32 %v799, %v803
    %v806 = vmul.f32 %v800, %v804
    %vm807 = vcmp.eq.f32.partialorder %v792, 0.0
    %vm808 = vcmp.eq.f32.partialorder %v798, 0.0
    %v809 = vsel %vm807, inf, %v805
    %v810 = vsel %vm808, inf, %v806
    %v811 = vmin.f32 %v809, 1.0
    %v812 = vmin.f32 %v810, 1.0
    %v813 = vmul.f32 %v30, %v811
    %v814 = vmul.f32 %v32, %v812
    %815 = vadd.xlane.f32.xlu0 %v813
    %v816 = vpop.xlane.xlu0 %815
    %817 = vadd.xlane.f32.xlu0 %v814
    %v818 = vpop.xlane.xlu0 %817
    %v819 = vrcp.pop %v816
    %v820 = vrcp.pop %v818
    %v821 = vmul.f32 %v816, %v819
    %v822 = vmul.f32 %v818, %v820
    %v823 = vsub.f32 2.0, %v821
    %v824 = vsub.f32 2.0, %v822
    %v825 = vmul.f32 %v819, %v823
    %v826 = vmul.f32 %v820, %v824
    %vm827 = vcmp.eq.f32.partialorder %v816, 0.0
    %vm828 = vcmp.eq.f32.partialorder %v818, 0.0
    %v829 = vsel %vm827, inf, %v825
    %v830 = vsel %vm828, inf, %v826
    %v831 = vmul.f32 %v30, %v829
    %v832 = vmul.f32 %v32, %v830
    %v833 = vrot.slane %v831, 4
    %v834 = vadd.f32 %v831, %v833
    %v835 = vrot.slane %v834, 2
    %v836 = vadd.f32 %v834, %v835
    %v837 = vrot.slane %v836, 1
    %v838 = vadd.f32 %v836, %v837
    %v839 = vrot.slane %v832, 4
    %v840 = vadd.f32 %v832, %v839
    %v841 = vrot.slane %v840, 2
    %v842 = vadd.f32 %v840, %v841
    %v843 = vrot.slane %v842, 1
    %v844 = vadd.f32 %v842, %v843
    %v845 = vrcp.pop %v838
    %v846 = vrcp.pop %v844
    %v847 = vmul.f32 %v838, %v845
    %v848 = vmul.f32 %v844, %v846
    %v849 = vsub.f32 2.0, %v847
    %v850 = vsub.f32 2.0, %v848
    %v851 = vmul.f32 %v845, %v849
    %v852 = vmul.f32 %v846, %v850
    %vm853 = vcmp.eq.f32.partialorder %v838, 0.0
    %vm854 = vcmp.eq.f32.partialorder %v844, 0.0
    %v855 = vsel %vm853, inf, %v851
    %v856 = vsel %vm854, inf, %v852
    %v857 = vmin.f32 %v855, 1.0
    %v858 = vmin.f32 %v856, 1.0
    %v859 = vmul.f32 %v30, %v857
    %v860 = vmul.f32 %v32, %v858
    %861 = vadd.xlane.f32.xlu0 %v859
    %v862 = vpop.xlane.xlu0 %861
    %863 = vadd.xlane.f32.xlu0 %v860
    %v864 = vpop.xlane.xlu0 %863
    %v865 = vrcp.pop %v862
    %v866 = vrcp.pop %v864
    %v867 = vmul.f32 %v862, %v865
    %v868 = vmul.f32 %v864, %v866
    %v869 = vsub.f32 2.0, %v867
    %v870 = vsub.f32 2.0, %v868
    %v871 = vmul.f32 %v865, %v869
    %v872 = vmul.f32 %v866, %v870
    %vm873 = vcmp.eq.f32.partialorder %v862, 0.0
    %vm874 = vcmp.eq.f32.partialorder %v864, 0.0
    %v875 = vsel %vm873, inf, %v871
    %v876 = vsel %vm874, inf, %v872
    %v877 = vmul.f32 %v30, %v875
    %v878 = vmul.f32 %v32, %v876
    %v879 = vrot.slane %v877, 4
    %v880 = vadd.f32 %v877, %v879
    %v881 = vrot.slane %v880, 2
    %v882 = vadd.f32 %v880, %v881
    %v883 = vrot.slane %v882, 1
    %v884 = vadd.f32 %v882, %v883
    %v885 = vrot.slane %v878, 4
    %v886 = vadd.f32 %v878, %v885
    %v887 = vrot.slane %v886, 2
    %v888 = vadd.f32 %v886, %v887
    %v889 = vrot.slane %v888, 1
    %v890 = vadd.f32 %v888, %v889
    %v891 = vrcp.pop %v884
    %v892 = vrcp.pop %v890
    %v893 = vmul.f32 %v884, %v891
    %v894 = vmul.f32 %v890, %v892
    %v895 = vsub.f32 2.0, %v893
    %v896 = vsub.f32 2.0, %v894
    %v897 = vmul.f32 %v891, %v895
    %v898 = vmul.f32 %v892, %v896
    %vm899 = vcmp.eq.f32.partialorder %v884, 0.0
    %vm900 = vcmp.eq.f32.partialorder %v890, 0.0
    %v901 = vsel %vm899, inf, %v897
    %v902 = vsel %vm900, inf, %v898
    %v903 = vmin.f32 %v901, 1.0
    %v904 = vmin.f32 %v902, 1.0
    %v905 = vmul.f32 %v30, %v903
    %v906 = vmul.f32 %v32, %v904
    %907 = vadd.xlane.f32.xlu0 %v905
    %v908 = vpop.xlane.xlu0 %907
    %909 = vadd.xlane.f32.xlu0 %v906
    %v910 = vpop.xlane.xlu0 %909
    %v911 = vrcp.pop %v908
    %v912 = vrcp.pop %v910
    %v913 = vmul.f32 %v908, %v911
    %v914 = vmul.f32 %v910, %v912
    %v915 = vsub.f32 2.0, %v913
    %v916 = vsub.f32 2.0, %v914
    %v917 = vmul.f32 %v911, %v915
    %v918 = vmul.f32 %v912, %v916
    %vm919 = vcmp.eq.f32.partialorder %v908, 0.0
    %vm920 = vcmp.eq.f32.partialorder %v910, 0.0
    %v921 = vsel %vm919, inf, %v917
    %v922 = vsel %vm920, inf, %v918
    %v923 = vmul.f32 %v30, %v921
    %v924 = vmul.f32 %v32, %v922
    %v925 = vrot.slane %v923, 4
    %v926 = vadd.f32 %v923, %v925
    %v927 = vrot.slane %v926, 2
    %v928 = vadd.f32 %v926, %v927
    %v929 = vrot.slane %v928, 1
    %v930 = vadd.f32 %v928, %v929
    %v931 = vrot.slane %v924, 4
    %v932 = vadd.f32 %v924, %v931
    %v933 = vrot.slane %v932, 2
    %v934 = vadd.f32 %v932, %v933
    %v935 = vrot.slane %v934, 1
    %v936 = vadd.f32 %v934, %v935
    %v937 = vrcp.pop %v930
    %v938 = vrcp.pop %v936
    %v939 = vmul.f32 %v930, %v937
    %v940 = vmul.f32 %v936, %v938
    %v941 = vsub.f32 2.0, %v939
    %v942 = vsub.f32 2.0, %v940
    %v943 = vmul.f32 %v937, %v941
    %v944 = vmul.f32 %v938, %v942
    %vm945 = vcmp.eq.f32.partialorder %v930, 0.0
    %vm946 = vcmp.eq.f32.partialorder %v936, 0.0
    %v947 = vsel %vm945, inf, %v943
    %v948 = vsel %vm946, inf, %v944
    %v949 = vmin.f32 %v947, 1.0
    %v950 = vmin.f32 %v948, 1.0
    %v951 = vmul.f32 %v923, %v949
    %v952 = vmul.f32 %v924, %v950
    %s953 = scalar_lea.vmem [#allocation5], %s23
    %954 = vst [vmem:[%s953] sm:$0xff] %v951
    %955 = vst [vmem:[%s953 + $0x8] sm:$0xff] %v952
    // Predicated region
    $region10: #{tpu_custom_call.1} parent=1 // pred_check
      _
    $region11: #{tpu_custom_call.1} parent=1 // pred_check_branch
      %957 = sbr.rel (0) target = $region13
    $region12: #{tpu_custom_call.1} parent=1 // pred_region
      %s959 = ssub.s32 256, 256
      %960 = vsyncadd [#allocation4], %s959
      %s961 = sshll.u32 [#allocation5], 4
      %s962 = int_to_ptr.vmem [resolvable:$true] %s961
      %967 = dma.vmem_to_hbm [thread:$0]  %s962, 256, %s1, [#allocation4], 128, 128, 8
    $region13: #{tpu_custom_call.1} parent=1 // pred_fallthru
      _
    // Predicated region
    $region14: #{tpu_custom_call.1} parent=1 // pred_check
      _
    $region15: #{tpu_custom_call.1} parent=1 // pred_check_branch
      %969 = sbr.rel (0) target = $region17
    $region16: #{tpu_custom_call.1} parent=1 // pred_region
      %970 = dma.done [#allocation4], 256
    $region17: #{tpu_custom_call.1} parent=1 // pred_fallthru
      _
    %971 = vsyncpa [#allocation3], 1
    %972 = vsyncpa [#allocation4], 1

</llo_original>
